<compile_context>
chip_gen: v5e
topology: v5e:2x2
jax: 0.10.0
libtpu: 0.0.40
codegen_flags: <defaults>
</compile_context>

<pallas_src>
import math
from functools import partial

import jax
import jax.numpy as jnp
from jax.experimental import pallas as pl
from jax.experimental.pallas import tpu as pltpu


PARAM_DTYPE = jnp.bfloat16


# ------------------------------ tiling helper -------------------------------

def _pick_tile(n, preferred, unit):
    """Largest tile <= preferred that divides n and is a multiple of `unit`;
    falls back to the full dimension (always a legal Pallas block)."""
    t = min(preferred, n)
    t -= t % unit
    while t >= unit:
        if n % t == 0:
            return t
        t -= unit
    return n


# ------------------------- fused RMSNorm + matmul ----------------------------

def _norm_matmul_kernel(x_ref, nw_ref, w_ref, o_ref, *, eps):
    x = x_ref[...].astype(jnp.float32)                          # (M, D)
    inv = jax.lax.rsqrt(jnp.mean(x * x, axis=-1, keepdims=True) + eps)
    xn = ((x * inv) * nw_ref[...].astype(jnp.float32)).astype(w_ref.dtype)
    o_ref[...] = jnp.dot(xn, w_ref[...],
                         preferred_element_type=jnp.float32).astype(o_ref.dtype)


def norm_matmul(x, nw, w_t, *, eps, out_dtype, tn_pref=512):
    # x: (M, D), nw: (1, D), w_t: (D, N).  Grid over N -> weight tiles stream
    # through VMEM double-buffered while the MXU works on the previous tile.
    M, D = x.shape
    N = w_t.shape[1]
    tn = _pick_tile(N, tn_pref, 128)
    return pl.pallas_call(
        partial(_norm_matmul_kernel, eps=eps),
        out_shape=jax.ShapeDtypeStruct((M, N), out_dtype),
        grid_spec=pltpu.PrefetchScalarGridSpec(
            num_scalar_prefetch=0,
            grid=(N // tn,),
            in_specs=[
                pl.BlockSpec((M, D), lambda j: (0, 0)),
                pl.BlockSpec((1, D), lambda j: (0, 0)),
                pl.BlockSpec((D, tn), lambda j: (0, j)),
            ],
            out_specs=pl.BlockSpec((M, tn), lambda j: (0, j)),
        ),
        compiler_params=pltpu.CompilerParams(
            dimension_semantics=("parallel",)),
    )(x, nw, w_t)


# --------------------- matmul with fused residual add ------------------------

def _matmul_residual_kernel(x_ref, w_ref, r_ref, o_ref):
    acc = jnp.dot(x_ref[...], w_ref[...], preferred_element_type=jnp.float32)
    o_ref[...] = (r_ref[...].astype(jnp.float32) + acc).astype(o_ref.dtype)


def matmul_residual(x, w_t, residual, *, tn_pref=512):
    # out = residual + x @ w_t, tiled over N.
    M, K = x.shape
    N = w_t.shape[1]
    tn = _pick_tile(N, tn_pref, 128)
    return pl.pallas_call(
        _matmul_residual_kernel,
        out_shape=jax.ShapeDtypeStruct((M, N), residual.dtype),
        grid_spec=pltpu.PrefetchScalarGridSpec(
            num_scalar_prefetch=0,
            grid=(N // tn,),
            in_specs=[
                pl.BlockSpec((M, K), lambda j: (0, 0)),
                pl.BlockSpec((K, tn), lambda j: (0, j)),
                pl.BlockSpec((M, tn), lambda j: (0, j)),
            ],
            out_specs=pl.BlockSpec((M, tn), lambda j: (0, j)),
        ),
        compiler_params=pltpu.CompilerParams(
            dimension_semantics=("parallel",)),
    )(x, w_t, residual)


# ----------------------------- RoPE (half-split) -----------------------------

def _rope_kernel(x_ref, cos_ref, sin_ref, o_ref, *, hd2):
    # x is in half-split head layout: [:hd2] = "real" parts, [hd2:] = "imag".
    x = x_ref[...].astype(jnp.float32)                          # (rows, hd)
    x1 = x[:, :hd2]
    x2 = x[:, hd2:]
    c = cos_ref[...]
    s = sin_ref[...]
    o_ref[:, :hd2] = (x1 * c - x2 * s).astype(o_ref.dtype)
    o_ref[:, hd2:] = (x1 * s + x2 * c).astype(o_ref.dtype)


def rope(x, cos_row, sin_row):
    # x: (rows, head_dim) with rows = B*(H + Hkv) (q and k rotated together
    # in a single launch).  cos/sin: (1, head_dim // 2) f32.
    R, hd = x.shape
    return pl.pallas_call(
        partial(_rope_kernel, hd2=hd // 2),
        out_shape=jax.ShapeDtypeStruct((R, hd), x.dtype),
        in_specs=[pl.BlockSpec(memory_space=pltpu.MemorySpace.VMEM)] * 3,
        out_specs=pl.BlockSpec(memory_space=pltpu.MemorySpace.VMEM),
    )(x, cos_row, sin_row)


# -------------------------- flash-decode attention ---------------------------

def _attn_decode_kernel(q_ref, k_ref, v_ref, o_ref, m_ref, l_ref, acc_ref,
                        *, scale, t_total, tkv):
    t = pl.program_id(0)

    @pl.when(t == 0)
    def _():
        m_ref[...] = jnp.full(m_ref.shape, -jnp.inf, jnp.float32)
        l_ref[...] = jnp.zeros(l_ref.shape, jnp.float32)
        acc_ref[...] = jnp.zeros(acc_ref.shape, jnp.float32)

    # q: (B*Hkv, n_rep, hd)   k/v tile: (B*Hkv, tkv, hd)
    s = jnp.einsum("bqd,bkd->bqk", q_ref[...], k_ref[...],
                   preferred_element_type=jnp.float32) * scale   # (BG, n_rep, tkv)
    pos = t * tkv + jax.lax.broadcasted_iota(jnp.int32, s.shape, 2)
    s = jnp.where(pos < t_total, s, -jnp.inf)

    m_prev = m_ref[...]
    m_new = jnp.maximum(m_prev, jnp.max(s, axis=-1, keepdims=True))
    alpha = jnp.exp(m_prev - m_new)
    p = jnp.exp(s - m_new)
    l_ref[...] = alpha * l_ref[...] + jnp.sum(p, axis=-1, keepdims=True)
    acc_ref[...] = alpha * acc_ref[...] + jnp.einsum(
        "bqk,bkd->bqd", p.astype(v_ref.dtype), v_ref[...],
        preferred_element_type=jnp.float32)
    m_ref[...] = m_new

    @pl.when(t == pl.num_programs(0) - 1)
    def _():
        o_ref[...] = (acc_ref[...] / l_ref[...]).astype(o_ref.dtype)


def flash_decode_attention(q, cache_k, cache_v, *, t_total, head_dim,
                           max_seq, tkv_pref=128):
    # q: (B*Hkv, n_rep, hd); cache_k/v: (max_batch*Hkv, max_seq, hd).
    # Grid over KV-length tiles (reduction axis, "arbitrary"), online softmax
    # in VMEM scratch; GQA handled by the shared leading batch*kv-head axis.
    BG, n_rep, hd = q.shape
    tkv = _pick_tile(max_seq, tkv_pref, 8)
    n_tiles = pl.cdiv(t_total, tkv)
    scale = 1.0 / math.sqrt(head_dim)
    return pl.pallas_call(
        partial(_attn_decode_kernel, scale=scale, t_total=t_total, tkv=tkv),
        out_shape=jax.ShapeDtypeStruct((BG, n_rep, hd), q.dtype),
        grid_spec=pltpu.PrefetchScalarGridSpec(
            num_scalar_prefetch=0,
            grid=(n_tiles,),
            in_specs=[
                pl.BlockSpec((BG, n_rep, hd), lambda t: (0, 0, 0)),
                pl.BlockSpec((BG, tkv, hd), lambda t: (0, t, 0)),
                pl.BlockSpec((BG, tkv, hd), lambda t: (0, t, 0)),
            ],
            out_specs=pl.BlockSpec((BG, n_rep, hd), lambda t: (0, 0, 0)),
            scratch_shapes=[
                pltpu.VMEM((BG, n_rep, 1), jnp.float32),
                pltpu.VMEM((BG, n_rep, 1), jnp.float32),
                pltpu.VMEM((BG, n_rep, hd), jnp.float32),
            ],
        ),
        compiler_params=pltpu.CompilerParams(
            dimension_semantics=("arbitrary",)),
    )(q, cache_k, cache_v)


# ------------- fused FFN: ffn_norm + SwiGLU + w2 + residual add ---------------

def _ffn_kernel(x_ref, nw_ref, w1_ref, w3_ref, w2_ref, o_ref, acc_ref, *, eps):
    k = pl.program_id(0)

    @pl.when(k == 0)
    def _():
        acc_ref[...] = jnp.zeros(acc_ref.shape, jnp.float32)

    x = x_ref[...].astype(jnp.float32)
    inv = jax.lax.rsqrt(jnp.mean(x * x, axis=-1, keepdims=True) + eps)
    xn = ((x * inv) * nw_ref[...].astype(jnp.float32)).astype(w1_ref.dtype)
    h1 = jnp.dot(xn, w1_ref[...], preferred_element_type=jnp.float32)
    h3 = jnp.dot(xn, w3_ref[...], preferred_element_type=jnp.float32)
    g = (h1 * (1.0 / (1.0 + jnp.exp(-h1)))) * h3                 # SiLU(h1) * h3
    acc_ref[...] += jnp.dot(g.astype(w2_ref.dtype), w2_ref[...],
                            preferred_element_type=jnp.float32)

    @pl.when(k == pl.num_programs(0) - 1)
    def _():
        o_ref[...] = (x_ref[...].astype(jnp.float32)
                      + acc_ref[...]).astype(o_ref.dtype)


def ffn_fused(x, nw, w1_t, w3_t, w2_t, *, eps, th_pref=512):
    # Grid over the hidden dimension (reduction) with an f32 output accumulator.
    M, D = x.shape
    Hdn = w1_t.shape[1]
    th = _pick_tile(Hdn, th_pref, 128)
    return pl.pallas_call(
        partial(_ffn_kernel, eps=eps),
        out_shape=jax.ShapeDtypeStruct((M, D), x.dtype),
        grid_spec=pltpu.PrefetchScalarGridSpec(
            num_scalar_prefetch=0,
            grid=(Hdn // th,),
            in_specs=[
                pl.BlockSpec((M, D), lambda k: (0, 0)),
                pl.BlockSpec((1, D), lambda k: (0, 0)),
                pl.BlockSpec((D, th), lambda k: (0, k)),
                pl.BlockSpec((D, th), lambda k: (0, k)),
                pl.BlockSpec((th, D), lambda k: (k, 0)),
            ],
            out_specs=pl.BlockSpec((M, D), lambda k: (0, 0)),
            scratch_shapes=[pltpu.VMEM((M, D), jnp.float32)],
        ),
        compiler_params=pltpu.CompilerParams(
            dimension_semantics=("arbitrary",)),
    )(x, nw, w1_t, w3_t, w2_t)


# ------------------------------ model glue -----------------------------------

def precompute_freqs(head_dim, seq_len, theta=10000.0):
    inv = 1.0 / (theta ** (jnp.arange(0, head_dim, 2, dtype=jnp.float32) / head_dim))
    m = jnp.arange(seq_len, dtype=jnp.float32)
    freqs = jnp.outer(m, inv)                                    # (seq_len, hd//2)
    return jnp.cos(freqs), jnp.sin(freqs)


def compute_hidden_dim(dim, multiple_of, ffn_dim_multiplier=None):
    hidden = 4 * dim
    hidden = int(2 * hidden / 3)
    if ffn_dim_multiplier is not None:
        hidden = int(ffn_dim_multiplier * hidden)
    return multiple_of * ((hidden + multiple_of - 1) // multiple_of)


def _half_split_permute(w_t, n_heads, head_dim):
    # Reorder a projection's output columns so each head's features come out
    # as [even..., odd...].  Applied identically to wq and wk the attention
    # scores are unchanged, and RoPE becomes two contiguous half multiplies.
    D = w_t.shape[0]
    w = w_t.reshape(D, n_heads, head_dim // 2, 2)
    return jnp.concatenate([w[..., 0], w[..., 1]], axis=-1).reshape(
        D, n_heads * head_dim)


def init_linear_t(key, in_dim, out_dim):
    # nn.Linear default: U(-1/sqrt(in), 1/sqrt(in)); stored transposed (in, out).
    bound = 1.0 / math.sqrt(in_dim)
    w = jax.random.uniform(key, (out_dim, in_dim), jnp.float32, -bound, bound)
    return jnp.transpose(w)


def init_params(key, cfg):
    dim, H, Hkv = cfg["dim"], cfg["n_heads"], cfg["n_kv_heads"]
    hd = dim // H
    hidden = cfg["hidden_dim"]
    keys = jax.random.split(key, 2 + cfg["n_layers"])
    cos, sin = precompute_freqs(hd, cfg["max_seq_len"] * 2)
    params = {
        "tok_emb": jax.random.normal(keys[0], (cfg["vocab_size"], dim),
                                     jnp.float32).astype(PARAM_DTYPE),
        "final_norm": jnp.ones((1, dim), jnp.float32),
        "out_t": init_linear_t(keys[1], dim, cfg["vocab_size"]).astype(PARAM_DTYPE),
        "cos": cos,
        "sin": sin,
        "layers": [],
    }
    for li in range(cfg["n_layers"]):
        lk = jax.random.split(keys[2 + li], 7)
        wq_t = _half_split_permute(init_linear_t(lk[0], dim, H * hd), H, hd)
        wk_t = _half_split_permute(init_linear_t(lk[1], dim, Hkv * hd), Hkv, hd)
        wv_t = init_linear_t(lk[2], dim, Hkv * hd)
        params["layers"].append({
            "attn_norm": jnp.ones((1, dim), jnp.float32),
            "ffn_norm": jnp.ones((1, dim), jnp.float32),
            "wqkv_t": jnp.concatenate([wq_t, wk_t, wv_t], axis=1).astype(PARAM_DTYPE),
            "wo_t": init_linear_t(lk[3], H * hd, dim).astype(PARAM_DTYPE),
            "w1_t": init_linear_t(lk[4], dim, hidden).astype(PARAM_DTYPE),
            "w3_t": init_linear_t(lk[5], dim, hidden).astype(PARAM_DTYPE),
            "w2_t": init_linear_t(lk[6], hidden, dim).astype(PARAM_DTYPE),
        })
    return params


def init_caches(cfg):
    hd = cfg["dim"] // cfg["n_heads"]
    shape = (cfg["max_batch_size"] * cfg["n_kv_heads"], cfg["max_seq_len"], hd)
    return [(jnp.zeros(shape, PARAM_DTYPE), jnp.zeros(shape, PARAM_DTYPE))
            for _ in range(cfg["n_layers"])]


def transformer_forward(params, caches, tokens, start_pos, cfg):
    B, S = tokens.shape
    assert S == 1, "Only one token at a time can be processed."
    dim, H, Hkv = cfg["dim"], cfg["n_heads"], cfg["n_kv_heads"]
    hd = dim // H
    n_rep = H // Hkv
    eps = cfg["norm_eps"]
    Nq, Nkv = H * hd, Hkv * hd
    T = start_pos + S

    # TODO(synk): embedding gather kept in plain JAX (data-dependent row gather).
    h = params["tok_emb"][tokens[:, 0]].astype(jnp.float32)      # (B, dim)
    cos_row = params["cos"][start_pos:start_pos + S]             # (1, hd//2)
    sin_row = params["sin"][start_pos:start_pos + S]

    new_caches = []
    for li, layer in enumerate(params["layers"]):
        # Fused attn-RMSNorm + concatenated QKV projection (tiled over N).
        qkv = norm_matmul(h, layer["attn_norm"], layer["wqkv_t"],
                          eps=eps, out_dtype=PARAM_DTYPE)        # (B, Nq+2*Nkv)
        q = qkv[:, :Nq].reshape(B, H, hd)
        k = qkv[:, Nq:Nq + Nkv].reshape(B, Hkv, hd)
        v = qkv[:, Nq + Nkv:].reshape(B, Hkv, hd)

        # RoPE on q and k together (half-split layout, one launch per layer).
        qk = jnp.concatenate([q, k], axis=1).reshape(B * (H + Hkv), hd)
        qk = rope(qk, cos_row, sin_row).reshape(B, H + Hkv, hd)
        q_rot = qk[:, :H].reshape(B * Hkv, n_rep, hd)
        k_rot = qk[:, H:].reshape(B * Hkv, 1, hd)
        v_new = v.reshape(B * Hkv, 1, hd)

        # KV-cache row write; caches are donated to the jit -> in-place update.
        ck, cv = caches[li]
        ck = jax.lax.dynamic_update_slice(ck, k_rot.astype(ck.dtype),
                                          (0, start_pos, 0))
        cv = jax.lax.dynamic_update_slice(cv, v_new.astype(cv.dtype),
                                          (0, start_pos, 0))
        new_caches.append((ck, cv))

        # Flash-decode attention straight off the GQA cache (no repeat_kv,
        # no transposes materialized in HBM).
        attn = flash_decode_attention(q_rot, ck, cv, t_total=T, head_dim=hd,
                                      max_seq=cfg["max_seq_len"])
        attn2d = attn.reshape(B, Nq)

        # wo projection with fused residual add.
        h = matmul_residual(attn2d, layer["wo_t"], h)

        # Fused ffn-RMSNorm + SwiGLU + w2 + residual (tiled over hidden dim).
        h = ffn_fused(h, layer["ffn_norm"], layer["w1_t"], layer["w3_t"],
                      layer["w2_t"], eps=eps)

    # Final RMSNorm fused into the LM head (tiled over vocab), f32 logits.
    logits = norm_matmul(h, params["final_norm"], params["out_t"],
                         eps=eps, out_dtype=jnp.float32)
    return logits.reshape(B, S, cfg["vocab_size"]), new_caches


def make_forward_fn(cfg):
    def fwd(params, caches, tokens, start_pos):
        return transformer_forward(params, caches, tokens, start_pos, cfg)
    # start_pos static (matches PyTorch int arg); caches donated for in-place
    # KV updates.
    return jax.jit(fwd, static_argnums=(3,), donate_argnums=(1,))


# --------------------------------- main ---------------------------------------

if __name__ == "__main__":
    cfg = {
        "dim": 32,
        "n_layers": 2,
        "n_heads": 4,
        "n_kv_heads": 2,
        "vocab_size": 64,
        "multiple_of": 32,
        "norm_eps": 1e-5,
        "max_batch_size": 2,
        "max_seq_len": 16,
    }
    cfg["hidden_dim"] = compute_hidden_dim(cfg["dim"], cfg["multiple_of"])

    key = jax.random.PRNGKey(0)
    pkey, tkey = jax.random.split(key)
    params = init_params(pkey, cfg)
    caches = init_caches(cfg)

    batch, seq = 2, 1
    tokens = jax.random.randint(tkey, (batch, seq), 0, cfg["vocab_size"],
                                dtype=jnp.int32)
    start_pos = 3  # static python int, matching the PyTorch call signature

    forward = make_forward_fn(cfg)
    logits, caches = forward(params, caches, tokens, start_pos)
    logits = jax.block_until_ready(logits)
    assert logits.shape == (batch, seq, cfg["vocab_size"])
    assert logits.dtype == jnp.float32
    print("KERNEL_OK")
</pallas_src>

<mosaic_0001>
module attributes {stable_mosaic.version = 11 : i64} {
  func.func @_norm_matmul_kernel(%arg0: i32, %arg1: memref<2x32xf32, #tpu.memory_space<vmem>>, %arg2: memref<1x32xf32, #tpu.memory_space<vmem>>, %arg3: memref<32x64xbf16, #tpu.memory_space<vmem>>, %arg4: memref<2x64xbf16, #tpu.memory_space<vmem>>) attributes {dimension_semantics = [#tpu.dimension_semantics<parallel>], iteration_bounds = array<i64: 1>, scalar_prefetch = 0 : i64, scratch_operands = 0 : i64, tpu.core_type = #tpu.core_type<tc>, window_params = [{pipeline_mode = #tpu.pipeline_mode<synchronous>, transform_indices = @transform_0, window_bounds = array<i64: 2, 32>}, {pipeline_mode = #tpu.pipeline_mode<synchronous>, transform_indices = @transform_1, window_bounds = array<i64: 1, 32>}, {transform_indices = @transform_2, window_bounds = array<i64: 32, 64>}, {transform_indices = @transform_3, window_bounds = array<i64: 2, 64>}]} {
    %c0 = arith.constant 0 : index
    %c0_0 = arith.constant 0 : index
    %0 = vector.load %arg1[%c0, %c0_0] : memref<2x32xf32, #tpu.memory_space<vmem>>, vector<2x32xf32>
    %1 = arith.mulf %0, %0 : vector<2x32xf32>
    %cst = arith.constant dense<0.000000e+00> : vector<2xf32>
    %2 = vector.multi_reduction <add>, %1, %cst [1] : vector<2x32xf32> to vector<2xf32>
    %3 = vector.shape_cast %2 : vector<2xf32> to vector<2x1xf32>
    %cst_1 = arith.constant 3.200000e+01 : f32
    %4 = vector.broadcast %cst_1 : f32 to vector<2x1xf32>
    %5 = arith.divf %3, %4 : vector<2x1xf32>
    %cst_2 = arith.constant 9.99999974E-6 : f32
    %6 = vector.broadcast %cst_2 : f32 to vector<2x1xf32>
    %7 = arith.addf %5, %6 : vector<2x1xf32>
    %8 = math.rsqrt %7 : vector<2x1xf32>
    %9 = vector.broadcast %8 : vector<2x1xf32> to vector<2x32xf32>
    %10 = arith.mulf %0, %9 : vector<2x32xf32>
    %c0_3 = arith.constant 0 : index
    %c0_4 = arith.constant 0 : index
    %11 = vector.load %arg2[%c0_3, %c0_4] : memref<1x32xf32, #tpu.memory_space<vmem>>, vector<1x32xf32>
    %12 = vector.broadcast %11 : vector<1x32xf32> to vector<2x32xf32>
    %13 = arith.mulf %10, %12 : vector<2x32xf32>
    %14 = arith.truncf %13 : vector<2x32xf32> to vector<2x32xbf16>
    %c0_5 = arith.constant 0 : index
    %c0_6 = arith.constant 0 : index
    %15 = vector.load %arg3[%c0_5, %c0_6] : memref<32x64xbf16, #tpu.memory_space<vmem>>, vector<32x64xbf16>
    %cst_7 = arith.constant dense<0.000000e+00> : vector<2x64xf32>
    %16 = tpu.matmul %14, %15, %cst_7 {dimension_numbers = #tpu.dot_dimension_numbers<[1], [0], [0], [1], [0, 0, 1, 1], [], []>} : vector<2x32xbf16>, vector<32x64xbf16>, vector<2x64xf32> -> vector<2x64xf32>
    %17 = arith.truncf %16 : vector<2x64xf32> to vector<2x64xbf16>
    %c0_8 = arith.constant 0 : index
    %c0_9 = arith.constant 0 : index
    %18 = vector.load %arg4[%c0_8, %c0_9] : memref<2x64xbf16, #tpu.memory_space<vmem>>, vector<2x64xbf16>
    tpu.vector_store %arg4[%c0_8, %c0_9], %17 {strides = array<i32>} : memref<2x64xbf16, #tpu.memory_space<vmem>>, vector<2x64xbf16>,
    return
  }
  func.func @transform_0(%arg0: i32) -> (i32, i32) {
    %c0_i32 = arith.constant 0 : i32
    %c0_i32_0 = arith.constant 0 : i32
    %c0_i32_1 = arith.constant 0 : i32
    return %c0_i32, %c0_i32_0 : i32, i32
  }
  func.func @transform_1(%arg0: i32) -> (i32, i32) {
    %c0_i32 = arith.constant 0 : i32
    %c0_i32_0 = arith.constant 0 : i32
    %c0_i32_1 = arith.constant 0 : i32
    return %c0_i32, %c0_i32_0 : i32, i32
  }
  func.func @transform_2(%arg0: i32) -> (i32, i32) {
    %c0_i32 = arith.constant 0 : i32
    %c0_i32_0 = arith.constant 0 : i32
    return %c0_i32, %arg0 : i32, i32
  }
  func.func @transform_3(%arg0: i32) -> (i32, i32) {
    %c0_i32 = arith.constant 0 : i32
    %c0_i32_0 = arith.constant 0 : i32
    return %c0_i32, %arg0 : i32, i32
  }
}

module attributes {stable_mosaic.version = 11 : i64} {
  func.func @_rope_kernel(%arg0: memref<12x8xbf16, #tpu.memory_space<vmem>>, %arg1: memref<1x4xf32, #tpu.memory_space<vmem>>, %arg2: memref<1x4xf32, #tpu.memory_space<vmem>>, %arg3: memref<12x8xbf16, #tpu.memory_space<vmem>>) attributes {dimension_semantics = [], scalar_prefetch = 0 : i64, scratch_operands = 0 : i64, tpu.core_type = #tpu.core_type<tc>} {
    %c0 = arith.constant 0 : index
    %c0_0 = arith.constant 0 : index
    %0 = vector.load %arg0[%c0, %c0_0] : memref<12x8xbf16, #tpu.memory_space<vmem>>, vector<12x8xbf16>
    %1 = arith.extf %0 : vector<12x8xbf16> to vector<12x8xf32>
    %2 = vector.extract_strided_slice %1 {offsets = [0, 0], sizes = [12, 4], strides = [1, 1]} : vector<12x8xf32> to vector<12x4xf32>
    %3 = vector.extract_strided_slice %1 {offsets = [0, 4], sizes = [12, 4], strides = [1, 1]} : vector<12x8xf32> to vector<12x4xf32>
    %c0_1 = arith.constant 0 : index
    %c0_2 = arith.constant 0 : index
    %4 = vector.load %arg1[%c0_1, %c0_2] : memref<1x4xf32, #tpu.memory_space<vmem>>, vector<1x4xf32>
    %c0_3 = arith.constant 0 : index
    %c0_4 = arith.constant 0 : index
    %5 = vector.load %arg2[%c0_3, %c0_4] : memref<1x4xf32, #tpu.memory_space<vmem>>, vector<1x4xf32>
    %6 = vector.broadcast %4 : vector<1x4xf32> to vector<12x4xf32>
    %7 = arith.mulf %2, %6 : vector<12x4xf32>
    %8 = vector.broadcast %5 : vector<1x4xf32> to vector<12x4xf32>
    %9 = arith.mulf %3, %8 : vector<12x4xf32>
    %10 = arith.subf %7, %9 : vector<12x4xf32>
    %11 = arith.truncf %10 : vector<12x4xf32> to vector<12x4xbf16>
    %c0_5 = arith.constant 0 : index
    %c0_6 = arith.constant 0 : index
    %12 = vector.load %arg3[%c0_5, %c0_6] : memref<12x8xbf16, #tpu.memory_space<vmem>>, vector<12x4xbf16>
    tpu.vector_store %arg3[%c0_5, %c0_6], %11 {strides = array<i32>} : memref<12x8xbf16, #tpu.memory_space<vmem>>, vector<12x4xbf16>,
    %13 = vector.broadcast %5 : vector<1x4xf32> to vector<12x4xf32>
    %14 = arith.mulf %2, %13 : vector<12x4xf32>
    %15 = vector.broadcast %4 : vector<1x4xf32> to vector<12x4xf32>
    %16 = arith.mulf %3, %15 : vector<12x4xf32>
    %17 = arith.addf %14, %16 : vector<12x4xf32>
    %18 = arith.truncf %17 : vector<12x4xf32> to vector<12x4xbf16>
    %c0_7 = arith.constant 0 : index
    %c4 = arith.constant 4 : index
    %19 = vector.load %arg3[%c0_7, %c4] : memref<12x8xbf16, #tpu.memory_space<vmem>>, vector<12x4xbf16>
    tpu.vector_store %arg3[%c0_7, %c4], %18 {strides = array<i32>} : memref<12x8xbf16, #tpu.memory_space<vmem>>, vector<12x4xbf16>,
    return
  }
}

module attributes {stable_mosaic.version = 11 : i64} {
  func.func @_attn_decode_kernel(%arg0: i32, %arg1: memref<4x2x8xbf16, #tpu.memory_space<vmem>>, %arg2: memref<4x16x8xbf16, #tpu.memory_space<vmem>>, %arg3: memref<4x16x8xbf16, #tpu.memory_space<vmem>>, %arg4: memref<4x2x8xbf16, #tpu.memory_space<vmem>>, %arg5: memref<4x2x1xf32, #tpu.memory_space<vmem>>, %arg6: memref<4x2x1xf32, #tpu.memory_space<vmem>>, %arg7: memref<4x2x8xf32, #tpu.memory_space<vmem>>) attributes {dimension_semantics = [#tpu.dimension_semantics<arbitrary>], iteration_bounds = array<i64: 1>, scalar_prefetch = 0 : i64, scratch_operands = 3 : i64, tpu.core_type = #tpu.core_type<tc>, window_params = [{pipeline_mode = #tpu.pipeline_mode<synchronous>, transform_indices = @transform_0, window_bounds = array<i64: 4, 2, 8>}, {transform_indices = @transform_1, window_bounds = array<i64: 4, 16, 8>}, {transform_indices = @transform_2, window_bounds = array<i64: 4, 16, 8>}, {pipeline_mode = #tpu.pipeline_mode<synchronous>, transform_indices = @transform_3, window_bounds = array<i64: 4, 2, 8>}]} {
    %c0_i32 = arith.constant 0 : i32
    %0 = arith.cmpi eq, %arg0, %c0_i32 : i32
    %1 = arith.extui %0 : i1 to i32
    %c0_i32_0 = arith.constant 0 : i32
    %2 = arith.cmpi ne, %1, %c0_i32_0 : i32
    scf.if %2 {
      %cst_34 = arith.constant 0xFF800000 : f32
      %43 = vector.broadcast %cst_34 : f32 to vector<4x2x1xf32>
      %c0_35 = arith.constant 0 : index
      %c0_36 = arith.constant 0 : index
      %c0_37 = arith.constant 0 : index
      %44 = vector.load %arg5[%c0_35, %c0_36, %c0_37] : memref<4x2x1xf32, #tpu.memory_space<vmem>>, vector<4x2x1xf32>
      tpu.vector_store %arg5[%c0_35, %c0_36, %c0_37], %43 {strides = array<i32>} : memref<4x2x1xf32, #tpu.memory_space<vmem>>, vector<4x2x1xf32>,
      %cst_38 = arith.constant 0.000000e+00 : f32
      %45 = vector.broadcast %cst_38 : f32 to vector<4x2x1xf32>
      %c0_39 = arith.constant 0 : index
      %c0_40 = arith.constant 0 : index
      %c0_41 = arith.constant 0 : index
      %46 = vector.load %arg6[%c0_39, %c0_40, %c0_41] : memref<4x2x1xf32, #tpu.memory_space<vmem>>, vector<4x2x1xf32>
      tpu.vector_store %arg6[%c0_39, %c0_40, %c0_41], %45 {strides = array<i32>} : memref<4x2x1xf32, #tpu.memory_space<vmem>>, vector<4x2x1xf32>,
      %cst_42 = arith.constant 0.000000e+00 : f32
      %47 = vector.broadcast %cst_42 : f32 to vector<4x2x8xf32>
      %c0_43 = arith.constant 0 : index
      %c0_44 = arith.constant 0 : index
      %c0_45 = arith.constant 0 : index
      %48 = vector.load %arg7[%c0_43, %c0_44, %c0_45] : memref<4x2x8xf32, #tpu.memory_space<vmem>>, vector<4x2x8xf32>
      tpu.vector_store %arg7[%c0_43, %c0_44, %c0_45], %47 {strides = array<i32>} : memref<4x2x8xf32, #tpu.memory_space<vmem>>, vector<4x2x8xf32>,
    } else {
    }
    %c0 = arith.constant 0 : index
    %c0_1 = arith.constant 0 : index
    %c0_2 = arith.constant 0 : index
    %3 = vector.load %arg1[%c0, %c0_1, %c0_2] : memref<4x2x8xbf16, #tpu.memory_space<vmem>>, vector<4x2x8xbf16>
    %c0_3 = arith.constant 0 : index
    %c0_4 = arith.constant 0 : index
    %c0_5 = arith.constant 0 : index
    %4 = vector.load %arg2[%c0_3, %c0_4, %c0_5] : memref<4x16x8xbf16, #tpu.memory_space<vmem>>, vector<4x16x8xbf16>
    "tpu.trace_start"() <{level = 10 : i32, message = "bqd,bkd->bqk"}> : () -> ()
    %cst = arith.constant dense<0.000000e+00> : vector<4x2x16xf32>
    %5 = tpu.matmul %3, %4, %cst {dimension_numbers = #tpu.dot_dimension_numbers<[2], [2], [1], [1], [0, 0, 0, 1, 1, 1], [0], [0]>} : vector<4x2x8xbf16>, vector<4x16x8xbf16>, vector<4x2x16xf32> -> vector<4x2x16xf32>
    "tpu.trace_stop"() : () -> ()
    %cst_6 = arith.constant 0.353553385 : f32
    %6 = vector.broadcast %cst_6 : f32 to vector<4x2x16xf32>
    %7 = arith.mulf %5, %6 : vector<4x2x16xf32>
    %c16_i32 = arith.constant 16 : i32
    %8 = arith.muli %arg0, %c16_i32 : i32
    %9 = tpu.iota {dimensions = array<i32: 2>} : vector<4x2x16xi32>
    %10 = vector.broadcast %8 : i32 to vector<4x2x16xi32>
    %11 = arith.addi %10, %9 : vector<4x2x16xi32>
    %c4_i32 = arith.constant 4 : i32
    %12 = vector.broadcast %c4_i32 : i32 to vector<4x2x16xi32>
    %13 = arith.cmpi slt, %11, %12 : vector<4x2x16xi32>
    %cst_7 = arith.constant 0xFF800000 : f32
    %14 = vector.broadcast %cst_7 : f32 to vector<4x2x16xf32>
    %15 = arith.select %13, %7, %14 : vector<4x2x16xi1>, vector<4x2x16xf32>
    %c0_8 = arith.constant 0 : index
    %c0_9 = arith.constant 0 : index
    %c0_10 = arith.constant 0 : index
    %16 = vector.load %arg5[%c0_8, %c0_9, %c0_10] : memref<4x2x1xf32, #tpu.memory_space<vmem>>, vector<4x2x1xf32>
    %cst_11 = arith.constant dense<0xFF800000> : vector<4x2xf32>
    %17 = vector.multi_reduction <maximumf>, %15, %cst_11 [2] : vector<4x2x16xf32> to vector<4x2xf32>
    %18 = vector.shape_cast %17 : vector<4x2xf32> to vector<4x2x1xf32>
    %19 = arith.maximumf %16, %18 : vector<4x2x1xf32>
    %20 = arith.subf %16, %19 : vector<4x2x1xf32>
    %21 = math.exp %20 : vector<4x2x1xf32>
    %22 = vector.broadcast %19 : vector<4x2x1xf32> to vector<4x2x16xf32>
    %23 = arith.subf %15, %22 : vector<4x2x16xf32>
    %24 = math.exp %23 : vector<4x2x16xf32>
    %c0_12 = arith.constant 0 : index
    %c0_13 = arith.constant 0 : index
    %c0_14 = arith.constant 0 : index
    %25 = vector.load %arg6[%c0_12, %c0_13, %c0_14] : memref<4x2x1xf32, #tpu.memory_space<vmem>>, vector<4x2x1xf32>
    %26 = arith.mulf %21, %25 : vector<4x2x1xf32>
    %cst_15 = arith.constant dense<0.000000e+00> : vector<4x2xf32>
    %27 = vector.multi_reduction <add>, %24, %cst_15 [2] : vector<4x2x16xf32> to vector<4x2xf32>
    %28 = vector.shape_cast %27 : vector<4x2xf32> to vector<4x2x1xf32>
    %29 = arith.addf %26, %28 : vector<4x2x1xf32>
    %c0_16 = arith.constant 0 : index
    %c0_17 = arith.constant 0 : index
    %c0_18 = arith.constant 0 : index
    %30 = vector.load %arg6[%c0_16, %c0_17, %c0_18] : memref<4x2x1xf32, #tpu.memory_space<vmem>>, vector<4x2x1xf32>
    tpu.vector_store %arg6[%c0_16, %c0_17, %c0_18], %29 {strides = array<i32>} : memref<4x2x1xf32, #tpu.memory_space<vmem>>, vector<4x2x1xf32>,
    %c0_19 = arith.constant 0 : index
    %c0_20 = arith.constant 0 : index
    %c0_21 = arith.constant 0 : index
    %31 = vector.load %arg7[%c0_19, %c0_20, %c0_21] : memref<4x2x8xf32, #tpu.memory_space<vmem>>, vector<4x2x8xf32>
    %32 = vector.broadcast %21 : vector<4x2x1xf32> to vector<4x2x8xf32>
    %33 = arith.mulf %32, %31 : vector<4x2x8xf32>
    %34 = arith.truncf %24 : vector<4x2x16xf32> to vector<4x2x16xbf16>
    %c0_22 = arith.constant 0 : index
    %c0_23 = arith.constant 0 : index
    %c0_24 = arith.constant 0 : index
    %35 = vector.load %arg3[%c0_22, %c0_23, %c0_24] : memref<4x16x8xbf16, #tpu.memory_space<vmem>>, vector<4x16x8xbf16>
    "tpu.trace_start"() <{level = 10 : i32, message = "bqk,bkd->bqd"}> : () -> ()
    %cst_25 = arith.constant dense<0.000000e+00> : vector<4x2x8xf32>
    %36 = tpu.matmul %34, %35, %cst_25 {dimension_numbers = #tpu.dot_dimension_numbers<[2], [1], [1], [2], [0, 0, 0, 1, 1, 2], [0], [0]>} : vector<4x2x16xbf16>, vector<4x16x8xbf16>, vector<4x2x8xf32> -> vector<4x2x8xf32>
    "tpu.trace_stop"() : () -> ()
    %37 = arith.addf %33, %36 : vector<4x2x8xf32>
    %c0_26 = arith.constant 0 : index
    %c0_27 = arith.constant 0 : index
    %c0_28 = arith.constant 0 : index
    %38 = vector.load %arg7[%c0_26, %c0_27, %c0_28] : memref<4x2x8xf32, #tpu.memory_space<vmem>>, vector<4x2x8xf32>
    tpu.vector_store %arg7[%c0_26, %c0_27, %c0_28], %37 {strides = array<i32>} : memref<4x2x8xf32, #tpu.memory_space<vmem>>, vector<4x2x8xf32>,
    %c0_29 = arith.constant 0 : index
    %c0_30 = arith.constant 0 : index
    %c0_31 = arith.constant 0 : index
    %39 = vector.load %arg5[%c0_29, %c0_30, %c0_31] : memref<4x2x1xf32, #tpu.memory_space<vmem>>, vector<4x2x1xf32>
    tpu.vector_store %arg5[%c0_29, %c0_30, %c0_31], %19 {strides = array<i32>} : memref<4x2x1xf32, #tpu.memory_space<vmem>>, vector<4x2x1xf32>,
    %c0_i32_32 = arith.constant 0 : i32
    %40 = arith.cmpi eq, %arg0, %c0_i32_32 : i32
    %41 = arith.extui %40 : i1 to i32
    %c0_i32_33 = arith.constant 0 : i32
    %42 = arith.cmpi ne, %41, %c0_i32_33 : i32
    scf.if %42 {
      %c0_34 = arith.constant 0 : index
      %c0_35 = arith.constant 0 : index
      %c0_36 = arith.constant 0 : index
      %43 = vector.load %arg7[%c0_34, %c0_35, %c0_36] : memref<4x2x8xf32, #tpu.memory_space<vmem>>, vector<4x2x8xf32>
      %c0_37 = arith.constant 0 : index
      %c0_38 = arith.constant 0 : index
      %c0_39 = arith.constant 0 : index
      %44 = vector.load %arg6[%c0_37, %c0_38, %c0_39] : memref<4x2x1xf32, #tpu.memory_space<vmem>>, vector<4x2x1xf32>
      %45 = vector.broadcast %44 : vector<4x2x1xf32> to vector<4x2x8xf32>
      %46 = arith.divf %43, %45 : vector<4x2x8xf32>
      %47 = arith.truncf %46 : vector<4x2x8xf32> to vector<4x2x8xbf16>
      %c0_40 = arith.constant 0 : index
      %c0_41 = arith.constant 0 : index
      %c0_42 = arith.constant 0 : index
      %48 = vector.load %arg4[%c0_40, %c0_41, %c0_42] : memref<4x2x8xbf16, #tpu.memory_space<vmem>>, vector<4x2x8xbf16>
      tpu.vector_store %arg4[%c0_40, %c0_41, %c0_42], %47 {strides = array<i32>} : memref<4x2x8xbf16, #tpu.memory_space<vmem>>, vector<4x2x8xbf16>,
    } else {
    }
    return
  }
  func.func @transform_0(%arg0: i32) -> (i32, i32, i32) {
    %c0_i32 = arith.constant 0 : i32
    %c0_i32_0 = arith.constant 0 : i32
    %c0_i32_1 = arith.constant 0 : i32
    %c0_i32_2 = arith.constant 0 : i32
    return %c0_i32, %c0_i32_0, %c0_i32_1 : i32, i32, i32
  }
  func.func @transform_1(%arg0: i32) -> (i32, i32, i32) {
    %c0_i32 = arith.constant 0 : i32
    %c0_i32_0 = arith.constant 0 : i32
    %c0_i32_1 = arith.constant 0 : i32
    return %c0_i32, %arg0, %c0_i32_0 : i32, i32, i32
  }
  func.func @transform_2(%arg0: i32) -> (i32, i32, i32) {
    %c0_i32 = arith.constant 0 : i32
    %c0_i32_0 = arith.constant 0 : i32
    %c0_i32_1 = arith.constant 0 : i32
    return %c0_i32, %arg0, %c0_i32_0 : i32, i32, i32
  }
  func.func @transform_3(%arg0: i32) -> (i32, i32, i32) {
    %c0_i32 = arith.constant 0 : i32
    %c0_i32_0 = arith.constant 0 : i32
    %c0_i32_1 = arith.constant 0 : i32
    %c0_i32_2 = arith.constant 0 : i32
    return %c0_i32, %c0_i32_0, %c0_i32_1 : i32, i32, i32
  }
}

module attributes {stable_mosaic.version = 11 : i64} {
  func.func @_matmul_residual_kernel(%arg0: i32, %arg1: memref<2x32xbf16, #tpu.memory_space<vmem>>, %arg2: memref<32x32xbf16, #tpu.memory_space<vmem>>, %arg3: memref<2x32xf32, #tpu.memory_space<vmem>>, %arg4: memref<2x32xf32, #tpu.memory_space<vmem>>) attributes {dimension_semantics = [#tpu.dimension_semantics<parallel>], iteration_bounds = array<i64: 1>, scalar_prefetch = 0 : i64, scratch_operands = 0 : i64, tpu.core_type = #tpu.core_type<tc>, window_params = [{pipeline_mode = #tpu.pipeline_mode<synchronous>, transform_indices = @transform_0, window_bounds = array<i64: 2, 32>}, {transform_indices = @transform_1, window_bounds = array<i64: 32, 32>}, {transform_indices = @transform_2, window_bounds = array<i64: 2, 32>}, {transform_indices = @transform_3, window_bounds = array<i64: 2, 32>}]} {
    %c0 = arith.constant 0 : index
    %c0_0 = arith.constant 0 : index
    %0 = vector.load %arg1[%c0, %c0_0] : memref<2x32xbf16, #tpu.memory_space<vmem>>, vector<2x32xbf16>
    %c0_1 = arith.constant 0 : index
    %c0_2 = arith.constant 0 : index
    %1 = vector.load %arg2[%c0_1, %c0_2] : memref<32x32xbf16, #tpu.memory_space<vmem>>, vector<32x32xbf16>
    %cst = arith.constant dense<0.000000e+00> : vector<2x32xf32>
    %2 = tpu.matmul %0, %1, %cst {dimension_numbers = #tpu.dot_dimension_numbers<[1], [0], [0], [1], [0, 0, 1, 1], [], []>} : vector<2x32xbf16>, vector<32x32xbf16>, vector<2x32xf32> -> vector<2x32xf32>
    %c0_3 = arith.constant 0 : index
    %c0_4 = arith.constant 0 : index
    %3 = vector.load %arg3[%c0_3, %c0_4] : memref<2x32xf32, #tpu.memory_space<vmem>>, vector<2x32xf32>
    %4 = arith.addf %3, %2 : vector<2x32xf32>
    %c0_5 = arith.constant 0 : index
    %c0_6 = arith.constant 0 : index
    %5 = vector.load %arg4[%c0_5, %c0_6] : memref<2x32xf32, #tpu.memory_space<vmem>>, vector<2x32xf32>
    tpu.vector_store %arg4[%c0_5, %c0_6], %4 {strides = array<i32>} : memref<2x32xf32, #tpu.memory_space<vmem>>, vector<2x32xf32>,
    return
  }
  func.func @transform_0(%arg0: i32) -> (i32, i32) {
    %c0_i32 = arith.constant 0 : i32
    %c0_i32_0 = arith.constant 0 : i32
    %c0_i32_1 = arith.constant 0 : i32
    return %c0_i32, %c0_i32_0 : i32, i32
  }
  func.func @transform_1(%arg0: i32) -> (i32, i32) {
    %c0_i32 = arith.constant 0 : i32
    %c0_i32_0 = arith.constant 0 : i32
    return %c0_i32, %arg0 : i32, i32
  }
  func.func @transform_2(%arg0: i32) -> (i32, i32) {
    %c0_i32 = arith.constant 0 : i32
    %c0_i32_0 = arith.constant 0 : i32
    return %c0_i32, %arg0 : i32, i32
  }
  func.func @transform_3(%arg0: i32) -> (i32, i32) {
    %c0_i32 = arith.constant 0 : i32
    %c0_i32_0 = arith.constant 0 : i32
    return %c0_i32, %arg0 : i32, i32
  }
}

module attributes {stable_mosaic.version = 11 : i64} {
  func.func @_ffn_kernel(%arg0: i32, %arg1: memref<2x32xf32, #tpu.memory_space<vmem>>, %arg2: memref<1x32xf32, #tpu.memory_space<vmem>>, %arg3: memref<32x96xbf16, #tpu.memory_space<vmem>>, %arg4: memref<32x96xbf16, #tpu.memory_space<vmem>>, %arg5: memref<96x32xbf16, #tpu.memory_space<vmem>>, %arg6: memref<2x32xf32, #tpu.memory_space<vmem>>, %arg7: memref<2x32xf32, #tpu.memory_space<vmem>>) attributes {dimension_semantics = [#tpu.dimension_semantics<arbitrary>], iteration_bounds = array<i64: 1>, scalar_prefetch = 0 : i64, scratch_operands = 1 : i64, tpu.core_type = #tpu.core_type<tc>, window_params = [{pipeline_mode = #tpu.pipeline_mode<synchronous>, transform_indices = @transform_0, window_bounds = array<i64: 2, 32>}, {pipeline_mode = #tpu.pipeline_mode<synchronous>, transform_indices = @transform_1, window_bounds = array<i64: 1, 32>}, {transform_indices = @transform_2, window_bounds = array<i64: 32, 96>}, {transform_indices = @transform_3, window_bounds = array<i64: 32, 96>}, {transform_indices = @transform_4, window_bounds = array<i64: 96, 32>}, {pipeline_mode = #tpu.pipeline_mode<synchronous>, transform_indices = @transform_5, window_bounds = array<i64: 2, 32>}]} {
    %c0_i32 = arith.constant 0 : i32
    %0 = arith.cmpi eq, %arg0, %c0_i32 : i32
    %1 = arith.extui %0 : i1 to i32
    %c0_i32_0 = arith.constant 0 : i32
    %2 = arith.cmpi ne, %1, %c0_i32_0 : i32
    scf.if %2 {
      %cst_24 = arith.constant 0.000000e+00 : f32
      %40 = vector.broadcast %cst_24 : f32 to vector<2x32xf32>
      %c0_25 = arith.constant 0 : index
      %c0_26 = arith.constant 0 : index
      %41 = vector.load %arg7[%c0_25, %c0_26] : memref<2x32xf32, #tpu.memory_space<vmem>>, vector<2x32xf32>
      tpu.vector_store %arg7[%c0_25, %c0_26], %40 {strides = array<i32>} : memref<2x32xf32, #tpu.memory_space<vmem>>, vector<2x32xf32>,
    } else {
    }
    %c0 = arith.constant 0 : index
    %c0_1 = arith.constant 0 : index
    %3 = vector.load %arg1[%c0, %c0_1] : memref<2x32xf32, #tpu.memory_space<vmem>>, vector<2x32xf32>
    %4 = arith.mulf %3, %3 : vector<2x32xf32>
    %cst = arith.constant dense<0.000000e+00> : vector<2xf32>
    %5 = vector.multi_reduction <add>, %4, %cst [1] : vector<2x32xf32> to vector<2xf32>
    %6 = vector.shape_cast %5 : vector<2xf32> to vector<2x1xf32>
    %cst_2 = arith.constant 3.200000e+01 : f32
    %7 = vector.broadcast %cst_2 : f32 to vector<2x1xf32>
    %8 = arith.divf %6, %7 : vector<2x1xf32>
    %cst_3 = arith.constant 9.99999974E-6 : f32
    %9 = vector.broadcast %cst_3 : f32 to vector<2x1xf32>
    %10 = arith.addf %8, %9 : vector<2x1xf32>
    %11 = math.rsqrt %10 : vector<2x1xf32>
    %12 = vector.broadcast %11 : vector<2x1xf32> to vector<2x32xf32>
    %13 = arith.mulf %3, %12 : vector<2x32xf32>
    %c0_4 = arith.constant 0 : index
    %c0_5 = arith.constant 0 : index
    %14 = vector.load %arg2[%c0_4, %c0_5] : memref<1x32xf32, #tpu.memory_space<vmem>>, vector<1x32xf32>
    %15 = vector.broadcast %14 : vector<1x32xf32> to vector<2x32xf32>
    %16 = arith.mulf %13, %15 : vector<2x32xf32>
    %17 = arith.truncf %16 : vector<2x32xf32> to vector<2x32xbf16>
    %c0_6 = arith.constant 0 : index
    %c0_7 = arith.constant 0 : index
    %18 = vector.load %arg3[%c0_6, %c0_7] : memref<32x96xbf16, #tpu.memory_space<vmem>>, vector<32x96xbf16>
    %cst_8 = arith.constant dense<0.000000e+00> : vector<2x96xf32>
    %19 = tpu.matmul %17, %18, %cst_8 {dimension_numbers = #tpu.dot_dimension_numbers<[1], [0], [0], [1], [0, 0, 1, 1], [], []>} : vector<2x32xbf16>, vector<32x96xbf16>, vector<2x96xf32> -> vector<2x96xf32>
    %c0_9 = arith.constant 0 : index
    %c0_10 = arith.constant 0 : index
    %20 = vector.load %arg4[%c0_9, %c0_10] : memref<32x96xbf16, #tpu.memory_space<vmem>>, vector<32x96xbf16>
    %cst_11 = arith.constant dense<0.000000e+00> : vector<2x96xf32>
    %21 = tpu.matmul %17, %20, %cst_11 {dimension_numbers = #tpu.dot_dimension_numbers<[1], [0], [0], [1], [0, 0, 1, 1], [], []>} : vector<2x32xbf16>, vector<32x96xbf16>, vector<2x96xf32> -> vector<2x96xf32>
    %cst_12 = arith.constant 0.000000e+00 : f32
    %22 = vector.broadcast %cst_12 : f32 to vector<2x96xf32>
    %23 = arith.subf %22, %19 : vector<2x96xf32>
    %24 = math.exp %23 : vector<2x96xf32>
    %cst_13 = arith.constant 1.000000e+00 : f32
    %25 = vector.broadcast %cst_13 : f32 to vector<2x96xf32>
    %26 = arith.addf %25, %24 : vector<2x96xf32>
    %cst_14 = arith.constant 1.000000e+00 : f32
    %27 = vector.broadcast %cst_14 : f32 to vector<2x96xf32>
    %28 = arith.divf %27, %26 : vector<2x96xf32>
    %29 = arith.mulf %19, %28 : vector<2x96xf32>
    %30 = arith.mulf %29, %21 : vector<2x96xf32>
    %c0_15 = arith.constant 0 : index
    %c0_16 = arith.constant 0 : index
    %31 = vector.load %arg7[%c0_15, %c0_16] : memref<2x32xf32, #tpu.memory_space<vmem>>, vector<2x32xf32>
    %32 = arith.truncf %30 : vector<2x96xf32> to vector<2x96xbf16>
    %c0_17 = arith.constant 0 : index
    %c0_18 = arith.constant 0 : index
    %33 = vector.load %arg5[%c0_17, %c0_18] : memref<96x32xbf16, #tpu.memory_space<vmem>>, vector<96x32xbf16>
    %cst_19 = arith.constant dense<0.000000e+00> : vector<2x32xf32>
    %34 = tpu.matmul %32, %33, %cst_19 {dimension_numbers = #tpu.dot_dimension_numbers<[1], [0], [0], [1], [0, 0, 1, 1], [], []>} : vector<2x96xbf16>, vector<96x32xbf16>, vector<2x32xf32> -> vector<2x32xf32>
    %35 = arith.addf %31, %34 : vector<2x32xf32>
    %c0_20 = arith.constant 0 : index
    %c0_21 = arith.constant 0 : index
    %36 = vector.load %arg7[%c0_20, %c0_21] : memref<2x32xf32, #tpu.memory_space<vmem>>, vector<2x32xf32>
    tpu.vector_store %arg7[%c0_20, %c0_21], %35 {strides = array<i32>} : memref<2x32xf32, #tpu.memory_space<vmem>>, vector<2x32xf32>,
    %c0_i32_22 = arith.constant 0 : i32
    %37 = arith.cmpi eq, %arg0, %c0_i32_22 : i32
    %38 = arith.extui %37 : i1 to i32
    %c0_i32_23 = arith.constant 0 : i32
    %39 = arith.cmpi ne, %38, %c0_i32_23 : i32
    scf.if %39 {
      %c0_24 = arith.constant 0 : index
      %c0_25 = arith.constant 0 : index
      %40 = vector.load %arg1[%c0_24, %c0_25] : memref<2x32xf32, #tpu.memory_space<vmem>>, vector<2x32xf32>
      %c0_26 = arith.constant 0 : index
      %c0_27 = arith.constant 0 : index
      %41 = vector.load %arg7[%c0_26, %c0_27] : memref<2x32xf32, #tpu.memory_space<vmem>>, vector<2x32xf32>
      %42 = arith.addf %40, %41 : vector<2x32xf32>
      %c0_28 = arith.constant 0 : index
      %c0_29 = arith.constant 0 : index
      %43 = vector.load %arg6[%c0_28, %c0_29] : memref<2x32xf32, #tpu.memory_space<vmem>>, vector<2x32xf32>
      tpu.vector_store %arg6[%c0_28, %c0_29], %42 {strides = array<i32>} : memref<2x32xf32, #tpu.memory_space<vmem>>, vector<2x32xf32>,
    } else {
    }
    return
  }
  func.func @transform_0(%arg0: i32) -> (i32, i32) {
    %c0_i32 = arith.constant 0 : i32
    %c0_i32_0 = arith.constant 0 : i32
    %c0_i32_1 = arith.constant 0 : i32
    return %c0_i32, %c0_i32_0 : i32, i32
  }
  func.func @transform_1(%arg0: i32) -> (i32, i32) {
    %c0_i32 = arith.constant 0 : i32
    %c0_i32_0 = arith.constant 0 : i32
    %c0_i32_1 = arith.constant 0 : i32
    return %c0_i32, %c0_i32_0 : i32, i32
  }
  func.func @transform_2(%arg0: i32) -> (i32, i32) {
    %c0_i32 = arith.constant 0 : i32
    %c0_i32_0 = arith.constant 0 : i32
    return %c0_i32, %arg0 : i32, i32
  }
  func.func @transform_3(%arg0: i32) -> (i32, i32) {
    %c0_i32 = arith.constant 0 : i32
    %c0_i32_0 = arith.constant 0 : i32
    return %c0_i32, %arg0 : i32, i32
  }
  func.func @transform_4(%arg0: i32) -> (i32, i32) {
    %c0_i32 = arith.constant 0 : i32
    %c0_i32_0 = arith.constant 0 : i32
    return %arg0, %c0_i32 : i32, i32
  }
  func.func @transform_5(%arg0: i32) -> (i32, i32) {
    %c0_i32 = arith.constant 0 : i32
    %c0_i32_0 = arith.constant 0 : i32
    %c0_i32_1 = arith.constant 0 : i32
    return %c0_i32, %c0_i32_0 : i32, i32
  }
}

module attributes {stable_mosaic.version = 11 : i64} {
  func.func @_norm_matmul_kernel(%arg0: i32, %arg1: memref<2x32xf32, #tpu.memory_space<vmem>>, %arg2: memref<1x32xf32, #tpu.memory_space<vmem>>, %arg3: memref<32x64xbf16, #tpu.memory_space<vmem>>, %arg4: memref<2x64xf32, #tpu.memory_space<vmem>>) attributes {dimension_semantics = [#tpu.dimension_semantics<parallel>], iteration_bounds = array<i64: 1>, scalar_prefetch = 0 : i64, scratch_operands = 0 : i64, tpu.core_type = #tpu.core_type<tc>, window_params = [{pipeline_mode = #tpu.pipeline_mode<synchronous>, transform_indices = @transform_0, window_bounds = array<i64: 2, 32>}, {pipeline_mode = #tpu.pipeline_mode<synchronous>, transform_indices = @transform_1, window_bounds = array<i64: 1, 32>}, {transform_indices = @transform_2, window_bounds = array<i64: 32, 64>}, {transform_indices = @transform_3, window_bounds = array<i64: 2, 64>}]} {
    %c0 = arith.constant 0 : index
    %c0_0 = arith.constant 0 : index
    %0 = vector.load %arg1[%c0, %c0_0] : memref<2x32xf32, #tpu.memory_space<vmem>>, vector<2x32xf32>
    %1 = arith.mulf %0, %0 : vector<2x32xf32>
    %cst = arith.constant dense<0.000000e+00> : vector<2xf32>
    %2 = vector.multi_reduction <add>, %1, %cst [1] : vector<2x32xf32> to vector<2xf32>
    %3 = vector.shape_cast %2 : vector<2xf32> to vector<2x1xf32>
    %cst_1 = arith.constant 3.200000e+01 : f32
    %4 = vector.broadcast %cst_1 : f32 to vector<2x1xf32>
    %5 = arith.divf %3, %4 : vector<2x1xf32>
    %cst_2 = arith.constant 9.99999974E-6 : f32
    %6 = vector.broadcast %cst_2 : f32 to vector<2x1xf32>
    %7 = arith.addf %5, %6 : vector<2x1xf32>
    %8 = math.rsqrt %7 : vector<2x1xf32>
    %9 = vector.broadcast %8 : vector<2x1xf32> to vector<2x32xf32>
    %10 = arith.mulf %0, %9 : vector<2x32xf32>
    %c0_3 = arith.constant 0 : index
    %c0_4 = arith.constant 0 : index
    %11 = vector.load %arg2[%c0_3, %c0_4] : memref<1x32xf32, #tpu.memory_space<vmem>>, vector<1x32xf32>
    %12 = vector.broadcast %11 : vector<1x32xf32> to vector<2x32xf32>
    %13 = arith.mulf %10, %12 : vector<2x32xf32>
    %14 = arith.truncf %13 : vector<2x32xf32> to vector<2x32xbf16>
    %c0_5 = arith.constant 0 : index
    %c0_6 = arith.constant 0 : index
    %15 = vector.load %arg3[%c0_5, %c0_6] : memref<32x64xbf16, #tpu.memory_space<vmem>>, vector<32x64xbf16>
    %cst_7 = arith.constant dense<0.000000e+00> : vector<2x64xf32>
    %16 = tpu.matmul %14, %15, %cst_7 {dimension_numbers = #tpu.dot_dimension_numbers<[1], [0], [0], [1], [0, 0, 1, 1], [], []>} : vector<2x32xbf16>, vector<32x64xbf16>, vector<2x64xf32> -> vector<2x64xf32>
    %c0_8 = arith.constant 0 : index
    %c0_9 = arith.constant 0 : index
    %17 = vector.load %arg4[%c0_8, %c0_9] : memref<2x64xf32, #tpu.memory_space<vmem>>, vector<2x64xf32>
    tpu.vector_store %arg4[%c0_8, %c0_9], %16 {strides = array<i32>} : memref<2x64xf32, #tpu.memory_space<vmem>>, vector<2x64xf32>,
    return
  }
  func.func @transform_0(%arg0: i32) -> (i32, i32) {
    %c0_i32 = arith.constant 0 : i32
    %c0_i32_0 = arith.constant 0 : i32
    %c0_i32_1 = arith.constant 0 : i32
    return %c0_i32, %c0_i32_0 : i32, i32
  }
  func.func @transform_1(%arg0: i32) -> (i32, i32) {
    %c0_i32 = arith.constant 0 : i32
    %c0_i32_0 = arith.constant 0 : i32
    %c0_i32_1 = arith.constant 0 : i32
    return %c0_i32, %c0_i32_0 : i32, i32
  }
  func.func @transform_2(%arg0: i32) -> (i32, i32) {
    %c0_i32 = arith.constant 0 : i32
    %c0_i32_0 = arith.constant 0 : i32
    return %c0_i32, %arg0 : i32, i32
  }
  func.func @transform_3(%arg0: i32) -> (i32, i32) {
    %c0_i32 = arith.constant 0 : i32
    %c0_i32_0 = arith.constant 0 : i32
    return %c0_i32, %arg0 : i32, i32
  }
}

</mosaic_0001>

<llo_original>
// kernel: fwd.12
$region0: #{fwd.12}
  #allocation0 [shape = 'u32[]', space=smem, size = 0x4, offset = 0x4, fixed_abs, tag = 'smem constant byte address 0x4 - core index']
  #allocation1 [shape = 'u32[72,128]{1,0:T(1,128)}', space=vmem, size = 0x9000, scoped, tag = 'internal scratch']
  %s0 = inlined_call_operand.vmem [shape: bf16[12,8], index: 0, kind: input, shape index: {}]
  %s1 = inlined_call_operand.vmem [shape: f32[1,4], index: 1, kind: input, shape index: {}]
  %s2 = inlined_call_operand.vmem [shape: f32[1,4], index: 2, kind: input, shape index: {}]
  %s3 = inlined_call_operand.vmem [shape: bf16[12,8], index: 3, kind: output, shape index: {}]
  %s4 = sld [smem:[#allocation0]]
  $region22: #{fwd.12} parent=0
    _
  %s6 = ssub.s32 1, %s4
  %s7 = scalar_select 0, %s6, %s4
  // Predicated region
  $region2: #{fwd.12} parent=0 // pred_check
    _
  $region3: #{fwd.12} parent=0 // pred_check_branch
    %9 = sbr.rel (0) target = $region5
  $region4: #{fwd.12} parent=0 // pred_region
    _
  $region5: #{fwd.12} parent=0 // pred_fallthru
    _
  // Predicated region
  $region6: #{fwd.12} parent=0 // pred_check
    _
  $region7: #{fwd.12} parent=0 // pred_check_branch
    %11 = sbr.rel (0) target = $region9
  $region8: #{fwd.12} parent=0 // pred_region
    _
  $region9: #{fwd.12} parent=0 // pred_fallthru
    _
  // Predicated region
  $region10: #{fwd.12} parent=0 // pred_check
    _
  $region11: #{fwd.12} parent=0 // pred_check_branch
    %13 = sbr.rel (0) target = $region13
  $region12: #{fwd.12} parent=0 // pred_region
    _
  $region13: #{fwd.12} parent=0 // pred_fallthru
    _
  %v14 = vld [vmem:[%s0] sm:$0xf]
  %v15 = vld [vmem:[%s0 + $0x4] sm:$0x3]
  %v16 = vunpack.c.l.bf16 %v14
  %v17 = vunpack.c.l.bf16 %v15
  %v18 = vld [vmem:[%s1] sm:$0x1]
  %v19 = vld [vmem:[%s2] sm:$0x1]
  %v21 = vperm.slane %v18, 0
  %v23 = vmul.f32 %v16, %v21
  %v24 = vmul.f32 %v17, %v21
  %v26 = vperm.slane %v19, 0
  %28 = vrot.lane.b32.xlu0 %v26, 4
  %v29 = vpop.permute.xlu0 %28
  %v31 = vmul.f32 %v16, %v29
  %v32 = vmul.f32 %v17, %v29
  %35 = vrot.lane.b32.xlu0 %v31, 124
  %v36 = vpop.permute.xlu0 %35
  %37 = vrot.lane.b32.xlu0 %v32, 124
  %v38 = vpop.permute.xlu0 %37
  %v41 = vsub.f32 %v23, %v36
  %v42 = vsub.f32 %v24, %v38
  %v43 = vpack.c.bf16 %v41, %v41
  %v44 = vpack.c.bf16 %v42, %v42
  %vm45 = vcmask 27648
  %46 = vst.msk [vmem:[%s3] sm:$0xf] %vm45, %v43
  %vm47 = vcmask 25600
  %48 = vst.msk [vmem:[%s3 + $0x4] sm:$0x3] %vm47, %v44
  %v49 = vmul.f32 %v16, %v26
  %v50 = vmul.f32 %v17, %v26
  %51 = vrot.lane.b32.xlu0 %v21, 4
  %v52 = vpop.permute.xlu0 %51
  %v54 = vmul.f32 %v16, %v52
  %v55 = vmul.f32 %v17, %v52
  %58 = vrot.lane.b32.xlu0 %v54, 124
  %v59 = vpop.permute.xlu0 %58
  %60 = vrot.lane.b32.xlu0 %v55, 124
  %v61 = vpop.permute.xlu0 %60
  %v64 = vadd.f32 %v49, %v59
  %v65 = vadd.f32 %v50, %v61
  %v66 = vpack.c.bf16 %v64, %v64
  %v67 = vpack.c.bf16 %v65, %v65
  %70 = vrot.lane.b32.xlu0 %v66, 4
  %v71 = vpop.permute.xlu0 %70
  %72 = vrot.lane.b32.xlu0 %v67, 4
  %v73 = vpop.permute.xlu0 %72
  %vm76 = vcmask 60448
  %77 = vst.msk [vmem:[%s3] sm:$0xf] %vm76, %v71
  %vm78 = vcmask 58400
  %79 = vst.msk [vmem:[%s3 + $0x4] sm:$0x3] %vm78, %v73
  // Predicated region
  $region14: #{fwd.12} parent=0 // pred_check
    _
  $region15: #{fwd.12} parent=0 // pred_check_branch
    %81 = sbr.rel (0) target = $region17
  $region16: #{fwd.12} parent=0 // pred_region
    _
  $region17: #{fwd.12} parent=0 // pred_fallthru
    _
  // Predicated region
  $region18: #{fwd.12} parent=0 // pred_check
    _
  $region19: #{fwd.12} parent=0 // pred_check_branch
    %83 = sbr.rel (0) target = $region21
  $region20: #{fwd.12} parent=0 // pred_region
    _
  $region21: #{fwd.12} parent=0 // pred_fallthru
    _

// kernel: fwd.11
$region0: #{fwd.11}
  #allocation0 [shape = 'u32[]', space=smem, size = 0x4, offset = 0x4, fixed_abs, tag = 'smem constant byte address 0x4 - core index']
  #allocation1 [shape = 'u32[72,128]{1,0:T(1,128)}', space=vmem, size = 0x9000, scoped, tag = 'internal scratch']
  %s0 = inlined_call_operand.vmem [shape: f32[2,32], index: 0, kind: input, shape index: {}]
  %s1 = inlined_call_operand.vmem [shape: f32[1,32], index: 1, kind: input, shape index: {}]
  %s2 = inlined_call_operand.vmem [shape: bf16[32,64], index: 2, kind: input, shape index: {}]
  %s3 = inlined_call_operand.vmem [shape: bf16[2,64], index: 3, kind: output, shape index: {}]
  %s4 = sld [smem:[#allocation0]]
  $region22: #{fwd.11} parent=0
    _
  %s6 = ssub.s32 1, %s4
  %s7 = scalar_select 0, %s6, %s4
  // Predicated region
  $region2: #{fwd.11} parent=0 // pred_check
    _
  $region3: #{fwd.11} parent=0 // pred_check_branch
    %9 = sbr.rel (0) target = $region5
  $region4: #{fwd.11} parent=0 // pred_region
    _
  $region5: #{fwd.11} parent=0 // pred_fallthru
    _
  // Predicated region
  $region6: #{fwd.11} parent=0 // pred_check
    _
  $region7: #{fwd.11} parent=0 // pred_check_branch
    %11 = sbr.rel (0) target = $region9
  $region8: #{fwd.11} parent=0 // pred_region
    _
  $region9: #{fwd.11} parent=0 // pred_fallthru
    _
  // Predicated region
  $region10: #{fwd.11} parent=0 // pred_check
    _
  $region11: #{fwd.11} parent=0 // pred_check_branch
    %13 = sbr.rel (0) target = $region13
  $region12: #{fwd.11} parent=0 // pred_region
    _
  $region13: #{fwd.11} parent=0 // pred_fallthru
    _
  %v15 = vld [vmem:[%s0] sm:$0x3]
  %v16 = vmul.f32 %v15, %v15
  %vm17 = vcmask 254976
  %v18 = vsel %vm17, %v16, 0.0
  %19 = vadd.xlane.f32.xlu0 %v18
  %v20 = vpop.xlane.xlu0 %19
  %v21 = vrcp.pop 32.0
  %v22 = vmul.f32 32.0, %v21
  %v23 = vsub.f32 1.0, %v22
  %v24 = vmul.f32 %v21, %v23
  %v25 = vadd.f32 %v21, %v24
  %vm26 = vweird.f32 %v21
  %v27 = vsel %vm26, %v21, %v25
  %v28 = vmul.f32 %v20, %v27
  %v29 = vadd.f32 %v28, 1e-05
  %v30 = vrsqrt.pop %v29
  %v31 = vmul.f32 %v30, %v29
  %v32 = vmul.f32 %v31, %v30
  %v33 = vmul.f32 0.5, %v32
  %v34 = vsub.f32 1.5, %v33
  %v35 = vmul.f32 %v30, %v34
  %vm36 = vweird.f32 %v29
  %vm37 = vweird.f32 %v30
  %vm38 = vmor %vm36, %vm37
  %v39 = vsel %vm38, %v30, %v35
  %v40 = vmul.f32 %v15, %v39
  %v41 = vld [vmem:[%s1] sm:$0x1]
  %v43 = vperm.slane %v41, 0
  %v45 = vmul.f32 %v40, %v43
  %v46 = vpack.c.bf16 %v45, %v45
  %v47 = vld [vmem:[%s2] sm:$0xf]
  %v48 = vld [vmem:[%s2 + $0x4] sm:$0xf]
  %v49 = vld [vmem:[%s2 + $0x8] sm:$0xf]
  %v50 = vld [vmem:[%s2 + $0xc] sm:$0xf]
  %v55 = vunpack.c.l.b16 %v47
  %v56 = vunpack.c.l.b16 %v48
  %v57 = vunpack.c.l.b16 %v49
  %v58 = vunpack.c.l.b16 %v50
  %v59 = vpack.c.b16 %v56, %v55
  %v60 = vpack.c.b16 %v58, %v57
  %vm63 = vcmask 261120
  %v65 = vsel %vm63, %v46, 0
  %67 = vmatpush.bf16.msra.mxu0 0
  %68 = vmatpush.bf16.msra.mxu0 0
  %69 = vmatpush.bf16.msra.mxu0 0
  %70 = vmatpush.bf16.msra.mxu0 0
  %71 = vmatpush.bf16.msra.mxu0 0
  %72 = vmatpush.bf16.msra.mxu0 0
  %73 = vmatpush.bf16.msra.mxu0 %v60
  %74 = vmatpush.bf16.msra.mxu0 %v59
  %75 = vmatmul.bf16.gmra.mxu0 %v65
  %v76 = vpop.f32.mrf.mxu0
  %v77 = vadd.f32 0.0, %v76
  %v78 = vpop.f32.mrf.mxu0
  %79 = vdwg.mxu0
  %v80 = vpack.c.bf16 %v77, %v77
  %vm81 = vcmask 516096
  %82 = vst.msk [vmem:[%s3] sm:$0x1] %vm81, %v80
  // Predicated region
  $region14: #{fwd.11} parent=0 // pred_check
    _
  $region15: #{fwd.11} parent=0 // pred_check_branch
    %84 = sbr.rel (0) target = $region17
  $region16: #{fwd.11} parent=0 // pred_region
    _
  $region17: #{fwd.11} parent=0 // pred_fallthru
    _
  // Predicated region
  $region18: #{fwd.11} parent=0 // pred_check
    _
  $region19: #{fwd.11} parent=0 // pred_check_branch
    %86 = sbr.rel (0) target = $region21
  $region20: #{fwd.11} parent=0 // pred_region
    _
  $region21: #{fwd.11} parent=0 // pred_fallthru
    _

// kernel: fwd.14
$region0: #{fwd.14}
  #allocation0 [shape = 'u32[]', space=smem, size = 0x4, offset = 0x4, fixed_abs, tag = 'smem constant byte address 0x4 - core index']
  #allocation1 [shape = 'u32[72,128]{1,0:T(1,128)}', space=vmem, size = 0x9000, scoped, tag = 'internal scratch']
  %s0 = inlined_call_operand.vmem [shape: bf16[2,32], index: 0, kind: input, shape index: {}]
  %s1 = inlined_call_operand.vmem [shape: bf16[32,32], index: 1, kind: input, shape index: {}]
  %s2 = inlined_call_operand.vmem [shape: f32[2,32], index: 2, kind: input, shape index: {}]
  %s3 = inlined_call_operand.vmem [shape: f32[2,32], index: 3, kind: output, shape index: {}]
  %s4 = sld [smem:[#allocation0]]
  $region22: #{fwd.14} parent=0
    _
  %s6 = ssub.s32 1, %s4
  %s7 = scalar_select 0, %s6, %s4
  // Predicated region
  $region2: #{fwd.14} parent=0 // pred_check
    _
  $region3: #{fwd.14} parent=0 // pred_check_branch
    %9 = sbr.rel (0) target = $region5
  $region4: #{fwd.14} parent=0 // pred_region
    _
  $region5: #{fwd.14} parent=0 // pred_fallthru
    _
  // Predicated region
  $region6: #{fwd.14} parent=0 // pred_check
    _
  $region7: #{fwd.14} parent=0 // pred_check_branch
    %11 = sbr.rel (0) target = $region9
  $region8: #{fwd.14} parent=0 // pred_region
    _
  $region9: #{fwd.14} parent=0 // pred_fallthru
    _
  // Predicated region
  $region10: #{fwd.14} parent=0 // pred_check
    _
  $region11: #{fwd.14} parent=0 // pred_check_branch
    %13 = sbr.rel (0) target = $region13
  $region12: #{fwd.14} parent=0 // pred_region
    _
  $region13: #{fwd.14} parent=0 // pred_fallthru
    _
  %v15 = vld [vmem:[%s0] sm:$0x1]
  %v16 = vld [vmem:[%s1] sm:$0xf]
  %v17 = vld [vmem:[%s1 + $0x4] sm:$0xf]
  %v18 = vld [vmem:[%s1 + $0x8] sm:$0xf]
  %v19 = vld [vmem:[%s1 + $0xc] sm:$0xf]
  %v24 = vunpack.c.l.b16 %v16
  %v25 = vunpack.c.l.b16 %v17
  %v26 = vunpack.c.l.b16 %v18
  %v27 = vunpack.c.l.b16 %v19
  %v28 = vpack.c.b16 %v25, %v24
  %v29 = vpack.c.b16 %v27, %v26
  %vm32 = vcmask 261120
  %v34 = vsel %vm32, %v15, 0
  %36 = vmatpush.bf16.msra.mxu0 0
  %37 = vmatpush.bf16.msra.mxu0 0
  %38 = vmatpush.bf16.msra.mxu0 0
  %39 = vmatpush.bf16.msra.mxu0 0
  %40 = vmatpush.bf16.msra.mxu0 0
  %41 = vmatpush.bf16.msra.mxu0 0
  %42 = vmatpush.bf16.msra.mxu0 %v29
  %43 = vmatpush.bf16.msra.mxu0 %v28
  %44 = vmatmul.bf16.gmra.mxu0 %v34
  %v45 = vpop.f32.mrf.mxu0
  %v46 = vadd.f32 0.0, %v45
  %v47 = vpop.f32.mrf.mxu0
  %48 = vdwg.mxu0
  %v49 = vld [vmem:[%s2] sm:$0x3]
  %v50 = vadd.f32 %v49, %v46
  %vm51 = vcmask 254976
  %52 = vst.msk [vmem:[%s3] sm:$0x3] %vm51, %v50
  // Predicated region
  $region14: #{fwd.14} parent=0 // pred_check
    _
  $region15: #{fwd.14} parent=0 // pred_check_branch
    %54 = sbr.rel (0) target = $region17
  $region16: #{fwd.14} parent=0 // pred_region
    _
  $region17: #{fwd.14} parent=0 // pred_fallthru
    _
  // Predicated region
  $region18: #{fwd.14} parent=0 // pred_check
    _
  $region19: #{fwd.14} parent=0 // pred_check_branch
    %56 = sbr.rel (0) target = $region21
  $region20: #{fwd.14} parent=0 // pred_region
    _
  $region21: #{fwd.14} parent=0 // pred_fallthru
    _

// kernel: fwd.13
$region0: #{fwd.13}
  #allocation0 [shape = 'u32[]', space=smem, size = 0x4, offset = 0x4, fixed_abs, tag = 'smem constant byte address 0x4 - core index']
  #allocation1 [shape = 'u32[72,128]{1,0:T(1,128)}', space=vmem, size = 0x9000, scoped, tag = 'internal scratch']
  #allocation2 [shape = 'f32[4,2,1]{2,1,0:T(2,128)}', space=vmem, size = 0x1000, scoped, tag = 'scratch operand']
  #allocation3 [shape = 'f32[4,2,1]{2,1,0:T(2,128)}', space=vmem, size = 0x1000, scoped, tag = 'scratch operand']
  #allocation4 [shape = 'f32[4,2,8]{2,1,0:T(2,128)}', space=vmem, size = 0x1000, scoped, tag = 'scratch operand']
  %s0 = inlined_call_operand.vmem [shape: bf16[4,2,8], index: 0, kind: input, shape index: {}]
  %s1 = inlined_call_operand.vmem [shape: bf16[4,16,8], index: 1, kind: input, shape index: {}]
  %s2 = inlined_call_operand.vmem [shape: bf16[4,16,8], index: 2, kind: input, shape index: {}]
  %s3 = inlined_call_operand.vmem [shape: bf16[4,2,8], index: 3, kind: output, shape index: {}]
  %s4 = sld [smem:[#allocation0]]
  $region30: #{fwd.13} parent=0
    _
  %s6 = ssub.s32 1, %s4
  %s7 = scalar_select 0, %s6, %s4
  // Predicated region
  $region2: #{fwd.13} parent=0 // pred_check
    _
  $region3: #{fwd.13} parent=0 // pred_check_branch
    %9 = sbr.rel (0) target = $region5
  $region4: #{fwd.13} parent=0 // pred_region
    _
  $region5: #{fwd.13} parent=0 // pred_fallthru
    _
  // Predicated region
  $region6: #{fwd.13} parent=0 // pred_check
    _
  $region7: #{fwd.13} parent=0 // pred_check_branch
    %11 = sbr.rel (0) target = $region9
  $region8: #{fwd.13} parent=0 // pred_region
    _
  $region9: #{fwd.13} parent=0 // pred_fallthru
    _
  // Predicated region
  $region10: #{fwd.13} parent=0 // pred_check
    _
  $region11: #{fwd.13} parent=0 // pred_check_branch
    %13 = sbr.rel (0) target = $region13
  $region12: #{fwd.13} parent=0 // pred_region
    _
  $region13: #{fwd.13} parent=0 // pred_fallthru
    _
  %p15 = scmp.eq.s32.totalorder 0, 0
  // Predicated region
  $region14: #{fwd.13} parent=0 // pred_check
    %p16 = pneg %p15
  $region15: #{fwd.13} parent=0 // pred_check_branch
    %18 = sbr.rel (%p16) target = $region17
  $region16: #{fwd.13} parent=0 // pred_region
    %vm19 = vcmask 1024
    %20 = vst.msk [vmem:[#allocation2] sm:$0x3] %vm19, -inf
    %21 = vst.msk [vmem:[#allocation2 + $0x2] sm:$0x3] %vm19, -inf
    %22 = vst.msk [vmem:[#allocation2 + $0x4] sm:$0x3] %vm19, -inf
    %23 = vst.msk [vmem:[#allocation2 + $0x6] sm:$0x3] %vm19, -inf
    %24 = vst.msk [vmem:[#allocation3] sm:$0x3] %vm19, 0.0
    %25 = vst.msk [vmem:[#allocation3 + $0x2] sm:$0x3] %vm19, 0.0
    %26 = vst.msk [vmem:[#allocation3 + $0x4] sm:$0x3] %vm19, 0.0
    %27 = vst.msk [vmem:[#allocation3 + $0x6] sm:$0x3] %vm19, 0.0
    %vm28 = vcmask 58368
    %29 = vst.msk [vmem:[#allocation4] sm:$0x3] %vm28, 0.0
    %30 = vst.msk [vmem:[#allocation4 + $0x2] sm:$0x3] %vm28, 0.0
    %31 = vst.msk [vmem:[#allocation4 + $0x4] sm:$0x3] %vm28, 0.0
    %32 = vst.msk [vmem:[#allocation4 + $0x6] sm:$0x3] %vm28, 0.0
  $region17: #{fwd.13} parent=0 // pred_fallthru
    _
  %v33 = vld [vmem:[%s0] sm:$0x1]
  %v34 = vld [vmem:[%s0 + $0x1] sm:$0x1]
  %v35 = vld [vmem:[%s0 + $0x2] sm:$0x1]
  %v36 = vld [vmem:[%s0 + $0x3] sm:$0x1]
  %v37 = vld [vmem:[%s1] sm:$0xf]
  %v38 = vld [vmem:[%s1 + $0x4] sm:$0xf]
  %v39 = vld [vmem:[%s1 + $0x8] sm:$0xf]
  %v40 = vld [vmem:[%s1 + $0xc] sm:$0xf]
  %v41 = vld [vmem:[%s1 + $0x10] sm:$0xf]
  %v42 = vld [vmem:[%s1 + $0x14] sm:$0xf]
  %v43 = vld [vmem:[%s1 + $0x18] sm:$0xf]
  %v44 = vld [vmem:[%s1 + $0x1c] sm:$0xf]
  %v47 = vunpack.c.l.b16 %v37
  %v48 = vunpack.c.l.b16 %v38
  %v49 = vpack.c.b16 %v48, %v47
  %vm50 = vcmask 64512
  %v52 = vsel %vm50, %v33, 0
  %v55 = vsel %vm50, %v49, 0
  %57 = vmatpush.bf16.xpose.msra.mxu0 0
  %58 = vmatpush.bf16.xpose.msra.mxu0 0
  %59 = vmatpush.bf16.xpose.msra.mxu0 0
  %60 = vmatpush.bf16.xpose.msra.mxu0 0
  %61 = vmatpush.bf16.xpose.msra.mxu0 0
  %62 = vmatpush.bf16.xpose.msra.mxu0 0
  %63 = vmatpush.bf16.xpose.msra.mxu0 0
  %64 = vmatpush.bf16.xpose.msra.mxu0 %v55
  %65 = vmatmul.bf16.gmra.mxu0 %v52
  %v66 = vpop.f32.mrf.mxu0
  %v67 = vadd.f32 0.0, %v66
  %v68 = vpop.f32.mrf.mxu0
  %69 = vdwg.mxu0
  %v72 = vunpack.c.l.b16 %v39
  %v73 = vunpack.c.l.b16 %v40
  %v74 = vpack.c.b16 %v73, %v72
  %v76 = vsel %vm50, %v34, 0
  %v79 = vsel %vm50, %v74, 0
  %81 = vmatpush.bf16.xpose.msra.mxu0 0
  %82 = vmatpush.bf16.xpose.msra.mxu0 0
  %83 = vmatpush.bf16.xpose.msra.mxu0 0
  %84 = vmatpush.bf16.xpose.msra.mxu0 0
  %85 = vmatpush.bf16.xpose.msra.mxu0 0
  %86 = vmatpush.bf16.xpose.msra.mxu0 0
  %87 = vmatpush.bf16.xpose.msra.mxu0 0
  %88 = vmatpush.bf16.xpose.msra.mxu0 %v79
  %89 = vmatmul.bf16.gmra.mxu0 %v76
  %v90 = vpop.f32.mrf.mxu0
  %v91 = vadd.f32 0.0, %v90
  %v92 = vpop.f32.mrf.mxu0
  %93 = vdwg.mxu0
  %v96 = vunpack.c.l.b16 %v41
  %v97 = vunpack.c.l.b16 %v42
  %v98 = vpack.c.b16 %v97, %v96
  %v100 = vsel %vm50, %v35, 0
  %v103 = vsel %vm50, %v98, 0
  %105 = vmatpush.bf16.xpose.msra.mxu0 0
  %106 = vmatpush.bf16.xpose.msra.mxu0 0
  %107 = vmatpush.bf16.xpose.msra.mxu0 0
  %108 = vmatpush.bf16.xpose.msra.mxu0 0
  %109 = vmatpush.bf16.xpose.msra.mxu0 0
  %110 = vmatpush.bf16.xpose.msra.mxu0 0
  %111 = vmatpush.bf16.xpose.msra.mxu0 0
  %112 = vmatpush.bf16.xpose.msra.mxu0 %v103
  %113 = vmatmul.bf16.gmra.mxu0 %v100
  %v114 = vpop.f32.mrf.mxu0
  %v115 = vadd.f32 0.0, %v114
  %v116 = vpop.f32.mrf.mxu0
  %117 = vdwg.mxu0
  %v120 = vunpack.c.l.b16 %v43
  %v121 = vunpack.c.l.b16 %v44
  %v122 = vpack.c.b16 %v121, %v120
  %v124 = vsel %vm50, %v36, 0
  %v127 = vsel %vm50, %v122, 0
  %129 = vmatpush.bf16.xpose.msra.mxu0 0
  %130 = vmatpush.bf16.xpose.msra.mxu0 0
  %131 = vmatpush.bf16.xpose.msra.mxu0 0
  %132 = vmatpush.bf16.xpose.msra.mxu0 0
  %133 = vmatpush.bf16.xpose.msra.mxu0 0
  %134 = vmatpush.bf16.xpose.msra.mxu0 0
  %135 = vmatpush.bf16.xpose.msra.mxu0 0
  %136 = vmatpush.bf16.xpose.msra.mxu0 %v127
  %137 = vmatmul.bf16.gmra.mxu0 %v124
  %v138 = vpop.f32.mrf.mxu0
  %v139 = vadd.f32 0.0, %v138
  %v140 = vpop.f32.mrf.mxu0
  %141 = vdwg.mxu0
  %v142 = vmul.f32 %v67, 0.35355338
  %v143 = vmul.f32 %v91, 0.35355338
  %v144 = vmul.f32 %v115, 0.35355338
  %v145 = vmul.f32 %v139, 0.35355338
  %s146 = smul.u32 0, 16
  %v147 = vlaneseq
  %v148 = vand.u32 %v147, 127
  %v149 = vstv %s146
  %v150 = vadd.s32 %v149, %v148
  %vm151 = vcmp.lt.s32.totalorder %v150, 4
  %v152 = vsel %vm151, %v142, -inf
  %v153 = vsel %vm151, %v143, -inf
  %v154 = vsel %vm151, %v144, -inf
  %v155 = vsel %vm151, %v145, -inf
  %v156 = vld [vmem:[#allocation2] sm:$0x3]
  %v157 = vld [vmem:[#allocation2 + $0x2] sm:$0x3]
  %v158 = vld [vmem:[#allocation2 + $0x4] sm:$0x3]
  %v159 = vld [vmem:[#allocation2 + $0x6] sm:$0x3]
  %vm160 = vcmask 123904
  %v161 = vsel %vm160, %v152, -inf
  %162 = vmax.xlane.f32.xlu0 %v161
  %v163 = vpop.xlane.xlu0 %162
  %v164 = vsel %vm160, %v153, -inf
  %165 = vmax.xlane.f32.xlu0 %v164
  %v166 = vpop.xlane.xlu0 %165
  %v167 = vsel %vm160, %v154, -inf
  %168 = vmax.xlane.f32.xlu0 %v167
  %v169 = vpop.xlane.xlu0 %168
  %v170 = vsel %vm160, %v155, -inf
  %171 = vmax.xlane.f32.xlu0 %v170
  %v172 = vpop.xlane.xlu0 %171
  %v173 = vmax.f32 %v156, %v163
  %v174 = vmax.f32 %v157, %v166
  %v175 = vmax.f32 %v158, %v169
  %v176 = vmax.f32 %v159, %v172
  %v177 = vsub.f32 %v156, %v173
  %v178 = vsub.f32 %v157, %v174
  %v179 = vsub.f32 %v158, %v175
  %v180 = vsub.f32 %v159, %v176
  %v181 = vmul.f32 %v177, 1.442695
  %v182 = vpow.pop %v181
  %v183 = vmul.f32 %v178, 1.442695
  %v184 = vpow.pop %v183
  %v185 = vmul.f32 %v179, 1.442695
  %v186 = vpow.pop %v185
  %v187 = vmul.f32 %v180, 1.442695
  %v188 = vpow.pop %v187
  %190 = vset.pattern.permute.xlu0 0
  %191 = vperm.xlu0 %190, %v173
  %v192 = vpop.permute.xlu0 %191
  %195 = vset.pattern.permute.xlu0 0
  %196 = vperm.xlu0 %195, %v174
  %v197 = vpop.permute.xlu0 %196
  %200 = vset.pattern.permute.xlu0 0
  %201 = vperm.xlu0 %200, %v175
  %v202 = vpop.permute.xlu0 %201
  %205 = vset.pattern.permute.xlu0 0
  %206 = vperm.xlu0 %205, %v176
  %v207 = vpop.permute.xlu0 %206
  %v209 = vsub.f32 %v152, %v192
  %v210 = vsub.f32 %v153, %v197
  %v211 = vsub.f32 %v154, %v202
  %v212 = vsub.f32 %v155, %v207
  %v213 = vmul.f32 %v209, 1.442695
  %v214 = vpow.pop %v213
  %v215 = vmul.f32 %v210, 1.442695
  %v216 = vpow.pop %v215
  %v217 = vmul.f32 %v211, 1.442695
  %v218 = vpow.pop %v217
  %v219 = vmul.f32 %v212, 1.442695
  %v220 = vpow.pop %v219
  %v221 = vld [vmem:[#allocation3] sm:$0x3]
  %v222 = vld [vmem:[#allocation3 + $0x2] sm:$0x3]
  %v223 = vld [vmem:[#allocation3 + $0x4] sm:$0x3]
  %v224 = vld [vmem:[#allocation3 + $0x6] sm:$0x3]
  %v225 = vmul.f32 %v182, %v221
  %v226 = vmul.f32 %v184, %v222
  %v227 = vmul.f32 %v186, %v223
  %v228 = vmul.f32 %v188, %v224
  %v229 = vsel %vm160, %v214, 0.0
  %230 = vadd.xlane.f32.xlu0 %v229
  %v231 = vpop.xlane.xlu0 %230
  %v232 = vsel %vm160, %v216, 0.0
  %233 = vadd.xlane.f32.xlu0 %v232
  %v234 = vpop.xlane.xlu0 %233
  %v235 = vsel %vm160, %v218, 0.0
  %236 = vadd.xlane.f32.xlu0 %v235
  %v237 = vpop.xlane.xlu0 %236
  %v238 = vsel %vm160, %v220, 0.0
  %239 = vadd.xlane.f32.xlu0 %v238
  %v240 = vpop.xlane.xlu0 %239
  %v241 = vadd.f32 %v225, %v231
  %v242 = vadd.f32 %v226, %v234
  %v243 = vadd.f32 %v227, %v237
  %v244 = vadd.f32 %v228, %v240
  %vm245 = vcmask 1024
  %246 = vst.msk [vmem:[#allocation3] sm:$0x3] %vm245, %v241
  %247 = vst.msk [vmem:[#allocation3 + $0x2] sm:$0x3] %vm245, %v242
  %248 = vst.msk [vmem:[#allocation3 + $0x4] sm:$0x3] %vm245, %v243
  %249 = vst.msk [vmem:[#allocation3 + $0x6] sm:$0x3] %vm245, %v244
  %v250 = vld [vmem:[#allocation4] sm:$0x3]
  %v251 = vld [vmem:[#allocation4 + $0x2] sm:$0x3]
  %v252 = vld [vmem:[#allocation4 + $0x4] sm:$0x3]
  %v253 = vld [vmem:[#allocation4 + $0x6] sm:$0x3]
  %255 = vset.pattern.permute.xlu0 0
  %256 = vperm.xlu0 %255, %v182
  %v257 = vpop.permute.xlu0 %256
  %260 = vset.pattern.permute.xlu0 0
  %261 = vperm.xlu0 %260, %v184
  %v262 = vpop.permute.xlu0 %261
  %265 = vset.pattern.permute.xlu0 0
  %266 = vperm.xlu0 %265, %v186
  %v267 = vpop.permute.xlu0 %266
  %270 = vset.pattern.permute.xlu0 0
  %271 = vperm.xlu0 %270, %v188
  %v272 = vpop.permute.xlu0 %271
  %v274 = vmul.f32 %v257, %v250
  %v275 = vmul.f32 %v262, %v251
  %v276 = vmul.f32 %v267, %v252
  %v277 = vmul.f32 %v272, %v253
  %v278 = vpack.c.bf16 %v214, %v214
  %v279 = vpack.c.bf16 %v216, %v216
  %v280 = vpack.c.bf16 %v218, %v218
  %v281 = vpack.c.bf16 %v220, %v220
  %v282 = vld [vmem:[%s2] sm:$0xf]
  %v283 = vld [vmem:[%s2 + $0x4] sm:$0xf]
  %v284 = vld [vmem:[%s2 + $0x8] sm:$0xf]
  %v285 = vld [vmem:[%s2 + $0xc] sm:$0xf]
  %v286 = vld [vmem:[%s2 + $0x10] sm:$0xf]
  %v287 = vld [vmem:[%s2 + $0x14] sm:$0xf]
  %v288 = vld [vmem:[%s2 + $0x18] sm:$0xf]
  %v289 = vld [vmem:[%s2 + $0x1c] sm:$0xf]
  %v292 = vunpack.c.l.b16 %v282
  %v293 = vunpack.c.l.b16 %v283
  %v294 = vpack.c.b16 %v293, %v292
  %vm296 = vcmask 130048
  %v298 = vsel %vm296, %v278, 0
  %300 = vmatpush.bf16.msra.mxu0 0
  %301 = vmatpush.bf16.msra.mxu0 0
  %302 = vmatpush.bf16.msra.mxu0 0
  %303 = vmatpush.bf16.msra.mxu0 0
  %304 = vmatpush.bf16.msra.mxu0 0
  %305 = vmatpush.bf16.msra.mxu0 0
  %306 = vmatpush.bf16.msra.mxu0 0
  %307 = vmatpush.bf16.msra.mxu0 %v294
  %308 = vmatmul.bf16.gmra.mxu0 %v298
  %v309 = vpop.f32.mrf.mxu0
  %v310 = vadd.f32 0.0, %v309
  %v311 = vpop.f32.mrf.mxu0
  %312 = vdwg.mxu0
  %v315 = vunpack.c.l.b16 %v284
  %v316 = vunpack.c.l.b16 %v285
  %v317 = vpack.c.b16 %v316, %v315
  %v320 = vsel %vm296, %v279, 0
  %322 = vmatpush.bf16.msra.mxu0 0
  %323 = vmatpush.bf16.msra.mxu0 0
  %324 = vmatpush.bf16.msra.mxu0 0
  %325 = vmatpush.bf16.msra.mxu0 0
  %326 = vmatpush.bf16.msra.mxu0 0
  %327 = vmatpush.bf16.msra.mxu0 0
  %328 = vmatpush.bf16.msra.mxu0 0
  %329 = vmatpush.bf16.msra.mxu0 %v317
  %330 = vmatmul.bf16.gmra.mxu0 %v320
  %v331 = vpop.f32.mrf.mxu0
  %v332 = vadd.f32 0.0, %v331
  %v333 = vpop.f32.mrf.mxu0
  %334 = vdwg.mxu0
  %v337 = vunpack.c.l.b16 %v286
  %v338 = vunpack.c.l.b16 %v287
  %v339 = vpack.c.b16 %v338, %v337
  %v342 = vsel %vm296, %v280, 0
  %344 = vmatpush.bf16.msra.mxu0 0
  %345 = vmatpush.bf16.msra.mxu0 0
  %346 = vmatpush.bf16.msra.mxu0 0
  %347 = vmatpush.bf16.msra.mxu0 0
  %348 = vmatpush.bf16.msra.mxu0 0
  %349 = vmatpush.bf16.msra.mxu0 0
  %350 = vmatpush.bf16.msra.mxu0 0
  %351 = vmatpush.bf16.msra.mxu0 %v339
  %352 = vmatmul.bf16.gmra.mxu0 %v342
  %v353 = vpop.f32.mrf.mxu0
  %v354 = vadd.f32 0.0, %v353
  %v355 = vpop.f32.mrf.mxu0
  %356 = vdwg.mxu0
  %v359 = vunpack.c.l.b16 %v288
  %v360 = vunpack.c.l.b16 %v289
  %v361 = vpack.c.b16 %v360, %v359
  %v364 = vsel %vm296, %v281, 0
  %366 = vmatpush.bf16.msra.mxu0 0
  %367 = vmatpush.bf16.msra.mxu0 0
  %368 = vmatpush.bf16.msra.mxu0 0
  %369 = vmatpush.bf16.msra.mxu0 0
  %370 = vmatpush.bf16.msra.mxu0 0
  %371 = vmatpush.bf16.msra.mxu0 0
  %372 = vmatpush.bf16.msra.mxu0 0
  %373 = vmatpush.bf16.msra.mxu0 %v361
  %374 = vmatmul.bf16.gmra.mxu0 %v364
  %v375 = vpop.f32.mrf.mxu0
  %v376 = vadd.f32 0.0, %v375
  %v377 = vpop.f32.mrf.mxu0
  %378 = vdwg.mxu0
  %v379 = vadd.f32 %v274, %v310
  %v380 = vadd.f32 %v275, %v332
  %v381 = vadd.f32 %v276, %v354
  %v382 = vadd.f32 %v277, %v376
  %vm383 = vcmask 58368
  %384 = vst.msk [vmem:[#allocation4] sm:$0x3] %vm383, %v379
  %385 = vst.msk [vmem:[#allocation4 + $0x2] sm:$0x3] %vm383, %v380
  %386 = vst.msk [vmem:[#allocation4 + $0x4] sm:$0x3] %vm383, %v381
  %387 = vst.msk [vmem:[#allocation4 + $0x6] sm:$0x3] %vm383, %v382
  %388 = vst.msk [vmem:[#allocation2] sm:$0x3] %vm245, %v173
  %389 = vst.msk [vmem:[#allocation2 + $0x2] sm:$0x3] %vm245, %v174
  %390 = vst.msk [vmem:[#allocation2 + $0x4] sm:$0x3] %vm245, %v175
  %391 = vst.msk [vmem:[#allocation2 + $0x6] sm:$0x3] %vm245, %v176
  // Predicated region
  $region18: #{fwd.13} parent=0 // pred_check
    %p392 = pneg %p15
  $region19: #{fwd.13} parent=0 // pred_check_branch
    %394 = sbr.rel (%p392) target = $region21
  $region20: #{fwd.13} parent=0 // pred_region
    %v395 = vld [vmem:[#allocation4] sm:$0x3]
    %v396 = vld [vmem:[#allocation4 + $0x2] sm:$0x3]
    %v397 = vld [vmem:[#allocation4 + $0x4] sm:$0x3]
    %v398 = vld [vmem:[#allocation4 + $0x6] sm:$0x3]
    %v399 = vld [vmem:[#allocation3] sm:$0x3]
    %v400 = vld [vmem:[#allocation3 + $0x2] sm:$0x3]
    %v401 = vld [vmem:[#allocation3 + $0x4] sm:$0x3]
    %v402 = vld [vmem:[#allocation3 + $0x6] sm:$0x3]
    %404 = vset.pattern.permute.xlu0 0
    %405 = vperm.xlu0 %404, %v399
    %v406 = vpop.permute.xlu0 %405
    %409 = vset.pattern.permute.xlu0 0
    %410 = vperm.xlu0 %409, %v400
    %v411 = vpop.permute.xlu0 %410
    %414 = vset.pattern.permute.xlu0 0
    %415 = vperm.xlu0 %414, %v401
    %v416 = vpop.permute.xlu0 %415
    %419 = vset.pattern.permute.xlu0 0
    %420 = vperm.xlu0 %419, %v402
    %v421 = vpop.permute.xlu0 %420
    %v423 = vrcp.pop %v406
    %v424 = vmul.f32 %v406, %v423
    %v425 = vsub.f32 1.0, %v424
    %v426 = vmul.f32 %v423, %v425
    %v427 = vadd.f32 %v423, %v426
    %vm428 = vweird.f32 %v406
    %vm429 = vweird.f32 %v423
    %vm430 = vmor %vm428, %vm429
    %v431 = vsel %vm430, %v423, %v427
    %v432 = vand.u32 2147483647, %v406
    %vm433 = vcmp.eq.f32.partialorder %v432, 8.507059e+37
    %v434 = vand.u32 %v406, 2147483648
    %v435 = vor.u32 1.1754944e-38, %v434
    %v436 = vsel %vm433, %v435, %v431
    %v437 = vmul.f32 %v395, %v436
    %v438 = vrcp.pop %v411
    %v439 = vmul.f32 %v411, %v438
    %v440 = vsub.f32 1.0, %v439
    %v441 = vmul.f32 %v438, %v440
    %v442 = vadd.f32 %v438, %v441
    %vm443 = vweird.f32 %v411
    %vm444 = vweird.f32 %v438
    %vm445 = vmor %vm443, %vm444
    %v446 = vsel %vm445, %v438, %v442
    %v447 = vand.u32 2147483647, %v411
    %vm448 = vcmp.eq.f32.partialorder %v447, 8.507059e+37
    %v449 = vand.u32 %v411, 2147483648
    %v450 = vor.u32 1.1754944e-38, %v449
    %v451 = vsel %vm448, %v450, %v446
    %v452 = vmul.f32 %v396, %v451
    %v453 = vrcp.pop %v416
    %v454 = vmul.f32 %v416, %v453
    %v455 = vsub.f32 1.0, %v454
    %v456 = vmul.f32 %v453, %v455
    %v457 = vadd.f32 %v453, %v456
    %vm458 = vweird.f32 %v416
    %vm459 = vweird.f32 %v453
    %vm460 = vmor %vm458, %vm459
    %v461 = vsel %vm460, %v453, %v457
    %v462 = vand.u32 2147483647, %v416
    %vm463 = vcmp.eq.f32.partialorder %v462, 8.507059e+37
    %v464 = vand.u32 %v416, 2147483648
    %v465 = vor.u32 1.1754944e-38, %v464
    %v466 = vsel %vm463, %v465, %v461
    %v467 = vmul.f32 %v397, %v466
    %v468 = vrcp.pop %v421
    %v469 = vmul.f32 %v421, %v468
    %v470 = vsub.f32 1.0, %v469
    %v471 = vmul.f32 %v468, %v470
    %v472 = vadd.f32 %v468, %v471
    %vm473 = vweird.f32 %v421
    %vm474 = vweird.f32 %v468
    %vm475 = vmor %vm473, %vm474
    %v476 = vsel %vm475, %v468, %v472
    %v477 = vand.u32 2147483647, %v421
    %vm478 = vcmp.eq.f32.partialorder %v477, 8.507059e+37
    %v479 = vand.u32 %v421, 2147483648
    %v480 = vor.u32 1.1754944e-38, %v479
    %v481 = vsel %vm478, %v480, %v476
    %v482 = vmul.f32 %v398, %v481
    %v483 = vpack.c.bf16 %v437, %v437
    %v484 = vpack.c.bf16 %v452, %v452
    %v485 = vpack.c.bf16 %v467, %v467
    %v486 = vpack.c.bf16 %v482, %v482
    %vm487 = vcmask 57344
    %488 = vst.msk [vmem:[%s3] sm:$0x1] %vm487, %v483
    %489 = vst.msk [vmem:[%s3 + $0x1] sm:$0x1] %vm487, %v484
    %490 = vst.msk [vmem:[%s3 + $0x2] sm:$0x1] %vm487, %v485
    %491 = vst.msk [vmem:[%s3 + $0x3] sm:$0x1] %vm487, %v486
  $region21: #{fwd.13} parent=0 // pred_fallthru
    _
  // Predicated region
  $region22: #{fwd.13} parent=0 // pred_check
    _
  $region23: #{fwd.13} parent=0 // pred_check_branch
    %493 = sbr.rel (0) target = $region25
  $region24: #{fwd.13} parent=0 // pred_region
    _
  $region25: #{fwd.13} parent=0 // pred_fallthru
    _
  // Predicated region
  $region26: #{fwd.13} parent=0 // pred_check
    _
  $region27: #{fwd.13} parent=0 // pred_check_branch
    %495 = sbr.rel (0) target = $region29
  $region28: #{fwd.13} parent=0 // pred_region
    _
  $region29: #{fwd.13} parent=0 // pred_fallthru
    _

// kernel: fwd.21
$region0: #{fwd.21}
  #allocation0 [shape = 'u32[]', space=smem, size = 0x4, offset = 0x4, fixed_abs, tag = 'smem constant byte address 0x4 - core index']
  #allocation1 [shape = 'u32[72,128]{1,0:T(1,128)}', space=vmem, size = 0x9000, scoped, tag = 'internal scratch']
  %s0 = inlined_call_operand.vmem [shape: f32[2,32], index: 0, kind: input, shape index: {}]
  %s1 = inlined_call_operand.vmem [shape: f32[1,32], index: 1, kind: input, shape index: {}]
  %s2 = inlined_call_operand.vmem [shape: bf16[32,64], index: 2, kind: input, shape index: {}]
  %s3 = inlined_call_operand.hbm [shape: f32[2,64], index: 3, kind: output, shape index: {}]
  %s4 = sld [smem:[#allocation0]]
  $region22: #{fwd.21} parent=0
    _
  %s6 = ssub.s32 1, %s4
  %s7 = scalar_select 0, %s6, %s4
  $region1: #{fwd.21} parent=0
    #allocation2 [shape = 'u8[1024]{0}', space=vmem, size = 0x400, scoped, tag = 'output window, operand 0, single buffered']
    #allocation3 [shape = 's32[1]{0}', space=sflag, size = 0x4, scoped, tag = 'scoped memory for fwd.21']
    %8 = vsyncpa [#allocation3], 0
    // Predicated region
    $region2: #{fwd.21} parent=1 // pred_check
      _
    $region3: #{fwd.21} parent=1 // pred_check_branch
      %10 = sbr.rel (0) target = $region5
    $region4: #{fwd.21} parent=1 // pred_region
      _
    $region5: #{fwd.21} parent=1 // pred_fallthru
      _
    // Predicated region
    $region6: #{fwd.21} parent=1 // pred_check
      _
    $region7: #{fwd.21} parent=1 // pred_check_branch
      %12 = sbr.rel (0) target = $region9
    $region8: #{fwd.21} parent=1 // pred_region
      _
    $region9: #{fwd.21} parent=1 // pred_fallthru
      _
    // Predicated region
    $region10: #{fwd.21} parent=1 // pred_check
      _
    $region11: #{fwd.21} parent=1 // pred_check_branch
      %14 = sbr.rel (0) target = $region13
    $region12: #{fwd.21} parent=1 // pred_region
      _
    $region13: #{fwd.21} parent=1 // pred_fallthru
      _
    %v16 = vld [vmem:[%s0] sm:$0x3]
    %v17 = vmul.f32 %v16, %v16
    %vm18 = vcmask 254976
    %v19 = vsel %vm18, %v17, 0.0
    %20 = vadd.xlane.f32.xlu0 %v19
    %v21 = vpop.xlane.xlu0 %20
    %v22 = vrcp.pop 32.0
    %v23 = vmul.f32 32.0, %v22
    %v24 = vsub.f32 1.0, %v23
    %v25 = vmul.f32 %v22, %v24
    %v26 = vadd.f32 %v22, %v25
    %vm27 = vweird.f32 %v22
    %v28 = vsel %vm27, %v22, %v26
    %v29 = vmul.f32 %v21, %v28
    %v30 = vadd.f32 %v29, 1e-05
    %v31 = vrsqrt.pop %v30
    %v32 = vmul.f32 %v31, %v30
    %v33 = vmul.f32 %v32, %v31
    %v34 = vmul.f32 0.5, %v33
    %v35 = vsub.f32 1.5, %v34
    %v36 = vmul.f32 %v31, %v35
    %vm37 = vweird.f32 %v30
    %vm38 = vweird.f32 %v31
    %vm39 = vmor %vm37, %vm38
    %v40 = vsel %vm39, %v31, %v36
    %v41 = vmul.f32 %v16, %v40
    %v42 = vld [vmem:[%s1] sm:$0x1]
    %v44 = vperm.slane %v42, 0
    %v46 = vmul.f32 %v41, %v44
    %v47 = vpack.c.bf16 %v46, %v46
    %v48 = vld [vmem:[%s2] sm:$0xf]
    %v49 = vld [vmem:[%s2 + $0x4] sm:$0xf]
    %v50 = vld [vmem:[%s2 + $0x8] sm:$0xf]
    %v51 = vld [vmem:[%s2 + $0xc] sm:$0xf]
    %v56 = vunpack.c.l.b16 %v48
    %v57 = vunpack.c.l.b16 %v49
    %v58 = vunpack.c.l.b16 %v50
    %v59 = vunpack.c.l.b16 %v51
    %v60 = vpack.c.b16 %v57, %v56
    %v61 = vpack.c.b16 %v59, %v58
    %vm64 = vcmask 261120
    %v66 = vsel %vm64, %v47, 0
    %68 = vmatpush.bf16.msra.mxu0 0
    %69 = vmatpush.bf16.msra.mxu0 0
    %70 = vmatpush.bf16.msra.mxu0 0
    %71 = vmatpush.bf16.msra.mxu0 0
    %72 = vmatpush.bf16.msra.mxu0 0
    %73 = vmatpush.bf16.msra.mxu0 0
    %74 = vmatpush.bf16.msra.mxu0 %v61
    %75 = vmatpush.bf16.msra.mxu0 %v60
    %76 = vmatmul.bf16.gmra.mxu0 %v66
    %v77 = vpop.f32.mrf.mxu0
    %v78 = vadd.f32 0.0, %v77
    %v79 = vpop.f32.mrf.mxu0
    %80 = vdwg.mxu0
    %vm81 = vcmask 517120
    %82 = vst.msk [vmem:[#allocation2] sm:$0x3] %vm81, %v78
    // Predicated region
    $region14: #{fwd.21} parent=1 // pred_check
      _
    $region15: #{fwd.21} parent=1 // pred_check_branch
      %84 = sbr.rel (0) target = $region17
    $region16: #{fwd.21} parent=1 // pred_region
      %86 = vsyncadd [#allocation3], 0
      %s88 = sshll.u32 [#allocation2], 4
      %s89 = int_to_ptr.vmem [resolvable:$true] %s88
      %s90 = sshll.u32 %s3, 4
      %s91 = int_to_ptr.hbm [resolvable:$true] %s90
      %93 = dma.vmem_to_hbm [thread:$0]  %s89, 32, %s91, [#allocation3]
    $region17: #{fwd.21} parent=1 // pred_fallthru
      _
    // Predicated region
    $region18: #{fwd.21} parent=1 // pred_check
      _
    $region19: #{fwd.21} parent=1 // pred_check_branch
      %95 = sbr.rel (0) target = $region21
    $region20: #{fwd.21} parent=1 // pred_region
      %97 = dma.done [#allocation3], 32
    $region21: #{fwd.21} parent=1 // pred_fallthru
      _
    %98 = vsyncpa [#allocation3], 1

// kernel: fwd.15
$region0: #{fwd.15}
  #allocation0 [shape = 'u32[]', space=smem, size = 0x4, offset = 0x4, fixed_abs, tag = 'smem constant byte address 0x4 - core index']
  #allocation1 [shape = 'u32[72,128]{1,0:T(1,128)}', space=vmem, size = 0x9000, scoped, tag = 'internal scratch']
  #allocation2 [shape = 'f32[2,32]{1,0:T(2,128)}', space=vmem, size = 0x400, scoped, tag = 'scratch operand']
  %s0 = inlined_call_operand.vmem [shape: f32[2,32], index: 0, kind: input, shape index: {}]
  %s1 = inlined_call_operand.vmem [shape: f32[1,32], index: 1, kind: input, shape index: {}]
  %s2 = inlined_call_operand.vmem [shape: bf16[32,96], index: 2, kind: input, shape index: {}]
  %s3 = inlined_call_operand.vmem [shape: bf16[32,96], index: 3, kind: input, shape index: {}]
  %s4 = inlined_call_operand.vmem [shape: bf16[96,32], index: 4, kind: input, shape index: {}]
  %s5 = inlined_call_operand.vmem [shape: f32[2,32], index: 5, kind: output, shape index: {}]
  %s6 = sld [smem:[#allocation0]]
  $region38: #{fwd.15} parent=0
    _
  %s8 = ssub.s32 1, %s6
  %s9 = scalar_select 0, %s8, %s6
  // Predicated region
  $region2: #{fwd.15} parent=0 // pred_check
    _
  $region3: #{fwd.15} parent=0 // pred_check_branch
    %11 = sbr.rel (0) target = $region5
  $region4: #{fwd.15} parent=0 // pred_region
    _
  $region5: #{fwd.15} parent=0 // pred_fallthru
    _
  // Predicated region
  $region6: #{fwd.15} parent=0 // pred_check
    _
  $region7: #{fwd.15} parent=0 // pred_check_branch
    %13 = sbr.rel (0) target = $region9
  $region8: #{fwd.15} parent=0 // pred_region
    _
  $region9: #{fwd.15} parent=0 // pred_fallthru
    _
  // Predicated region
  $region10: #{fwd.15} parent=0 // pred_check
    _
  $region11: #{fwd.15} parent=0 // pred_check_branch
    %15 = sbr.rel (0) target = $region13
  $region12: #{fwd.15} parent=0 // pred_region
    _
  $region13: #{fwd.15} parent=0 // pred_fallthru
    _
  // Predicated region
  $region14: #{fwd.15} parent=0 // pred_check
    _
  $region15: #{fwd.15} parent=0 // pred_check_branch
    %17 = sbr.rel (0) target = $region17
  $region16: #{fwd.15} parent=0 // pred_region
    _
  $region17: #{fwd.15} parent=0 // pred_fallthru
    _
  // Predicated region
  $region18: #{fwd.15} parent=0 // pred_check
    _
  $region19: #{fwd.15} parent=0 // pred_check_branch
    %19 = sbr.rel (0) target = $region21
  $region20: #{fwd.15} parent=0 // pred_region
    _
  $region21: #{fwd.15} parent=0 // pred_fallthru
    _
  %p21 = scmp.eq.s32.totalorder 0, 0
  // Predicated region
  $region22: #{fwd.15} parent=0 // pred_check
    %p22 = pneg %p21
  $region23: #{fwd.15} parent=0 // pred_check_branch
    %24 = sbr.rel (%p22) target = $region25
  $region24: #{fwd.15} parent=0 // pred_region
    %vm25 = vcmask 254976
    %26 = vst.msk [vmem:[#allocation2] sm:$0x3] %vm25, 0.0
  $region25: #{fwd.15} parent=0 // pred_fallthru
    _
  %v27 = vld [vmem:[%s0] sm:$0x3]
  %v28 = vmul.f32 %v27, %v27
  %vm29 = vcmask 254976
  %v30 = vsel %vm29, %v28, 0.0
  %31 = vadd.xlane.f32.xlu0 %v30
  %v32 = vpop.xlane.xlu0 %31
  %v33 = vrcp.pop 32.0
  %v34 = vmul.f32 32.0, %v33
  %v35 = vsub.f32 1.0, %v34
  %v36 = vmul.f32 %v33, %v35
  %v37 = vadd.f32 %v33, %v36
  %vm38 = vweird.f32 %v33
  %v39 = vsel %vm38, %v33, %v37
  %v40 = vmul.f32 %v32, %v39
  %v41 = vadd.f32 %v40, 1e-05
  %v42 = vrsqrt.pop %v41
  %v43 = vmul.f32 %v42, %v41
  %v44 = vmul.f32 %v43, %v42
  %v45 = vmul.f32 0.5, %v44
  %v46 = vsub.f32 1.5, %v45
  %v47 = vmul.f32 %v42, %v46
  %vm48 = vweird.f32 %v41
  %vm49 = vweird.f32 %v42
  %vm50 = vmor %vm48, %vm49
  %v51 = vsel %vm50, %v42, %v47
  %v52 = vmul.f32 %v27, %v51
  %v53 = vld [vmem:[%s1] sm:$0x1]
  %v55 = vperm.slane %v53, 0
  %v57 = vmul.f32 %v52, %v55
  %v58 = vpack.c.bf16 %v57, %v57
  %v59 = vld [vmem:[%s2] sm:$0xf]
  %v60 = vld [vmem:[%s2 + $0x4] sm:$0xf]
  %v61 = vld [vmem:[%s2 + $0x8] sm:$0xf]
  %v62 = vld [vmem:[%s2 + $0xc] sm:$0xf]
  %v67 = vunpack.c.l.b16 %v59
  %v68 = vunpack.c.l.b16 %v60
  %v69 = vunpack.c.l.b16 %v61
  %v70 = vunpack.c.l.b16 %v62
  %v71 = vpack.c.b16 %v68, %v67
  %v72 = vpack.c.b16 %v70, %v69
  %vm75 = vcmask 261120
  %v77 = vsel %vm75, %v58, 0
  %79 = vmatpush.bf16.msra.mxu0 0
  %80 = vmatpush.bf16.msra.mxu0 0
  %81 = vmatpush.bf16.msra.mxu0 0
  %82 = vmatpush.bf16.msra.mxu0 0
  %83 = vmatpush.bf16.msra.mxu0 0
  %84 = vmatpush.bf16.msra.mxu0 0
  %85 = vmatpush.bf16.msra.mxu0 %v72
  %86 = vmatpush.bf16.msra.mxu0 %v71
  %87 = vmatmul.bf16.gmra.mxu0 %v77
  %v88 = vpop.f32.mrf.mxu0
  %v89 = vadd.f32 0.0, %v88
  %v90 = vpop.f32.mrf.mxu0
  %91 = vdwg.mxu0
  %v92 = vld [vmem:[%s3] sm:$0xf]
  %v93 = vld [vmem:[%s3 + $0x4] sm:$0xf]
  %v94 = vld [vmem:[%s3 + $0x8] sm:$0xf]
  %v95 = vld [vmem:[%s3 + $0xc] sm:$0xf]
  %v100 = vunpack.c.l.b16 %v92
  %v101 = vunpack.c.l.b16 %v93
  %v102 = vunpack.c.l.b16 %v94
  %v103 = vunpack.c.l.b16 %v95
  %v104 = vpack.c.b16 %v101, %v100
  %v105 = vpack.c.b16 %v103, %v102
  %108 = vmatpush.bf16.msra.mxu0 0
  %109 = vmatpush.bf16.msra.mxu0 0
  %110 = vmatpush.bf16.msra.mxu0 0
  %111 = vmatpush.bf16.msra.mxu0 0
  %112 = vmatpush.bf16.msra.mxu0 0
  %113 = vmatpush.bf16.msra.mxu0 0
  %114 = vmatpush.bf16.msra.mxu0 %v105
  %115 = vmatpush.bf16.msra.mxu0 %v104
  %116 = vmatmul.bf16.gmra.mxu0 %v77
  %v117 = vpop.f32.mrf.mxu0
  %v118 = vadd.f32 0.0, %v117
  %v119 = vpop.f32.mrf.mxu0
  %120 = vdwg.mxu0
  %v121 = vsub.f32 0.0, %v89
  %v122 = vmul.f32 %v121, 1.442695
  %v123 = vpow.pop %v122
  %v124 = vadd.f32 %v123, 1.0
  %v125 = vrcp.pop %v124
  %v126 = vmul.f32 %v124, %v125
  %v127 = vsub.f32 1.0, %v126
  %v128 = vmul.f32 %v125, %v127
  %v129 = vadd.f32 %v125, %v128
  %vm130 = vweird.f32 %v124
  %vm131 = vweird.f32 %v125
  %vm132 = vmor %vm130, %vm131
  %v133 = vsel %vm132, %v125, %v129
  %v134 = vand.u32 2147483647, %v124
  %vm135 = vcmp.eq.f32.partialorder %v134, 8.507059e+37
  %v136 = vand.u32 %v124, 2147483648
  %v137 = vor.u32 1.1754944e-38, %v136
  %v138 = vsel %vm135, %v137, %v133
  %v139 = vmul.f32 1.0, %v138
  %v140 = vmul.f32 %v89, %v139
  %v141 = vmul.f32 %v140, %v118
  %v142 = vld [vmem:[#allocation2] sm:$0x3]
  %v143 = vpack.c.bf16 %v141, %v141
  %v144 = vld [vmem:[%s4] sm:$0xf]
  %v145 = vld [vmem:[%s4 + $0x4] sm:$0xf]
  %v146 = vld [vmem:[%s4 + $0x8] sm:$0xf]
  %v147 = vld [vmem:[%s4 + $0xc] sm:$0xf]
  %v148 = vld [vmem:[%s4 + $0x10] sm:$0xf]
  %v149 = vld [vmem:[%s4 + $0x14] sm:$0xf]
  %v150 = vld [vmem:[%s4 + $0x18] sm:$0xf]
  %v151 = vld [vmem:[%s4 + $0x1c] sm:$0xf]
  %v152 = vld [vmem:[%s4 + $0x20] sm:$0xf]
  %v153 = vld [vmem:[%s4 + $0x24] sm:$0xf]
  %v154 = vld [vmem:[%s4 + $0x28] sm:$0xf]
  %v155 = vld [vmem:[%s4 + $0x2c] sm:$0xf]
  %v168 = vunpack.c.l.b16 %v144
  %v169 = vunpack.c.l.b16 %v145
  %v170 = vunpack.c.l.b16 %v146
  %v171 = vunpack.c.l.b16 %v147
  %v172 = vunpack.c.l.b16 %v148
  %v173 = vunpack.c.l.b16 %v149
  %v174 = vunpack.c.l.b16 %v150
  %v175 = vunpack.c.l.b16 %v151
  %v176 = vunpack.c.l.b16 %v152
  %v177 = vunpack.c.l.b16 %v153
  %v178 = vunpack.c.l.b16 %v154
  %v179 = vunpack.c.l.b16 %v155
  %v180 = vpack.c.b16 %v169, %v168
  %v181 = vpack.c.b16 %v171, %v170
  %v182 = vpack.c.b16 %v173, %v172
  %v183 = vpack.c.b16 %v175, %v174
  %v184 = vpack.c.b16 %v177, %v176
  %v185 = vpack.c.b16 %v179, %v178
  %vm192 = vcmask 785408
  %v194 = vsel %vm192, %v143, 0
  %196 = vmatpush.bf16.msra.mxu0 0
  %197 = vmatpush.bf16.msra.mxu0 0
  %198 = vmatpush.bf16.msra.mxu0 %v185
  %199 = vmatpush.bf16.msra.mxu0 %v184
  %200 = vmatpush.bf16.msra.mxu0 %v183
  %201 = vmatpush.bf16.msra.mxu0 %v182
  %202 = vmatpush.bf16.msra.mxu0 %v181
  %203 = vmatpush.bf16.msra.mxu0 %v180
  %204 = vmatmul.bf16.gmra.mxu0 %v194
  %v205 = vpop.f32.mrf.mxu0
  %v206 = vadd.f32 0.0, %v205
  %v207 = vpop.f32.mrf.mxu0
  %208 = vdwg.mxu0
  %v209 = vadd.f32 %v142, %v206
  %210 = vst.msk [vmem:[#allocation2] sm:$0x3] %vm29, %v209
  // Predicated region
  $region26: #{fwd.15} parent=0 // pred_check
    %p211 = pneg %p21
  $region27: #{fwd.15} parent=0 // pred_check_branch
    %213 = sbr.rel (%p211) target = $region29
  $region28: #{fwd.15} parent=0 // pred_region
    %v214 = vld [vmem:[%s0] sm:$0x3]
    %v215 = vld [vmem:[#allocation2] sm:$0x3]
    %v216 = vadd.f32 %v214, %v215
    %217 = vst.msk [vmem:[%s5] sm:$0x3] %vm29, %v216
  $region29: #{fwd.15} parent=0 // pred_fallthru
    _
  // Predicated region
  $region30: #{fwd.15} parent=0 // pred_check
    _
  $region31: #{fwd.15} parent=0 // pred_check_branch
    %219 = sbr.rel (0) target = $region33
  $region32: #{fwd.15} parent=0 // pred_region
    _
  $region33: #{fwd.15} parent=0 // pred_fallthru
    _
  // Predicated region
  $region34: #{fwd.15} parent=0 // pred_check
    _
  $region35: #{fwd.15} parent=0 // pred_check_branch
    %221 = sbr.rel (0) target = $region37
  $region36: #{fwd.15} parent=0 // pred_region
    _
  $region37: #{fwd.15} parent=0 // pred_fallthru
    _

</llo_original>
